<compile_context>
chip_gen: v5e
topology: v5e:2x2
jax: 0.10.0
libtpu: 0.0.40
codegen_flags: <defaults>
</compile_context>

<pallas_src>
import math

import jax
import jax.numpy as jnp
from jax.experimental import pallas as pl
from jax.experimental.pallas import tpu as pltpu  # noqa: F401  (TPU backend)

# ----------------------------- model config --------------------------------
VOCAB = 64
D_MODEL = 32
N_HEADS = 4
HEAD_DIM = D_MODEL // N_HEADS
D_FFN = 64
N_LAYERS = 2
MAX_SEQ = 16
LORA_R = 4
LORA_ALPHA = 8
LORA_SCALING = LORA_ALPHA / LORA_R
LN_EPS = 1e-5
NEG_INF = -1e9
ATTN_SCALE = 1.0 / math.sqrt(HEAD_DIM)


def _full_spec(shape):
    # whole array as a single block (tiny synthetic shapes -> no grid needed)
    return pl.BlockSpec(shape, lambda *_: (0,) * len(shape))


# ------------------------------ fused kernel --------------------------------
def _fused_lm_kernel(h0_ref, mask2d_ref,
                     wqkv_ref, bqkv_ref, wo_ref, bo_ref,
                     w1_ref, b1_ref, w2_ref, b2_ref,
                     lnf_g_ref, lnf_b_ref, out_ref):
    """All transformer layers fused; activations stay resident on-chip.

    LN1/LN2 affine params and the attention scale are pre-folded into
    wqkv/bqkv and w1/b1, so in-kernel LayerNorms are affine-free.
    """
    h = h0_ref[...]                       # (M, D) f32
    mask2d = mask2d_ref[...]              # (M, M) additive bias (block-diag + key padding)

    def ln_noaffine(x):
        mu = jnp.mean(x, axis=-1, keepdims=True)
        xc = x - mu
        var = jnp.mean(xc * xc, axis=-1, keepdims=True)
        return xc * jax.lax.rsqrt(var + LN_EPS)

    for l in range(N_LAYERS):             # static unroll; per-layer weights sliced once
        # ---- attention block (pre-LN; gamma/beta folded into wqkv/bqkv) ----
        x = ln_noaffine(h)
        qkv = jnp.dot(x, wqkv_ref[l], preferred_element_type=jnp.float32) + bqkv_ref[l]
        q = qkv[:, 0 * D_MODEL:1 * D_MODEL]          # already scaled by 1/sqrt(hd)
        k = qkv[:, 1 * D_MODEL:2 * D_MODEL]
        v = qkv[:, 2 * D_MODEL:3 * D_MODEL]

        ctx_heads = []
        for hh in range(N_HEADS):         # heads sliced on the lane axis; no HBM transposes
            lo, hi = hh * HEAD_DIM, (hh + 1) * HEAD_DIM
            qh, kh, vh = q[:, lo:hi], k[:, lo:hi], v[:, lo:hi]
            # scores = qh @ kh^T over the whole flattened batch; cross-batch /
            # padded keys are removed by the additive mask2d bias.
            s = jax.lax.dot_general(qh, kh, (((1,), (1,)), ((), ())),
                                    preferred_element_type=jnp.float32)
            s = s + mask2d
            m = jnp.max(s, axis=-1, keepdims=True)
            p = jnp.exp(s - m)
            denom = jnp.sum(p, axis=-1, keepdims=True)
            p = p * pl.reciprocal(denom, approx=True)          # EUP, frees VALU slots
            ctx_heads.append(jnp.dot(p, vh, preferred_element_type=jnp.float32))
        ctx = jnp.concatenate(ctx_heads, axis=-1)              # (M, D)

        o = jnp.dot(ctx, wo_ref[l], preferred_element_type=jnp.float32) + bo_ref[l]
        h = h + o

        # ---- MLP block (pre-LN; gamma/beta folded into w1/b1) ----
        x = ln_noaffine(h)
        m1 = jnp.dot(x, w1_ref[l], preferred_element_type=jnp.float32) + b1_ref[l]
        m1 = jax.nn.gelu(m1)
        m2 = jnp.dot(m1, w2_ref[l], preferred_element_type=jnp.float32) + b2_ref[l]
        h = h + m2

    # final layer norm (keeps its affine) -> last_hidden_state
    out_ref[...] = ln_noaffine(h) * lnf_g_ref[...] + lnf_b_ref[...]


def _fused_forward(h0_2d, mask2d, stacked):
    M = h0_2d.shape[0]
    operands = (h0_2d, mask2d,
                stacked["wqkv"], stacked["bqkv"], stacked["wo"], stacked["bo"],
                stacked["w1"], stacked["b1"], stacked["w2"], stacked["b2"],
                stacked["lnf_g"], stacked["lnf_b"])
    return pl.pallas_call(
        _fused_lm_kernel,
        out_shape=jax.ShapeDtypeStruct((M, D_MODEL), jnp.float32),
        in_specs=[_full_spec(op.shape) for op in operands],
        out_specs=_full_spec((M, D_MODEL)),
    )(*operands)


# ------------------------------ parameters ----------------------------------
def _normal(key, shape, std=0.02):
    return (std * jax.random.normal(key, shape)).astype(jnp.float32)


def init_params(key):
    """Raw LoRA-style parameters (base W + LoRA A/B per adapted projection)."""
    keys = iter(jax.random.split(key, 8 + N_LAYERS * 32))
    nxt = lambda: next(keys)
    params = {
        "embed": _normal(nxt(), (VOCAB, D_MODEL)),
        "pos": _normal(nxt(), (MAX_SEQ, D_MODEL)),
        "ln_f_g": jnp.ones((1, D_MODEL), jnp.float32),
        "ln_f_b": jnp.zeros((1, D_MODEL), jnp.float32),
        "layers": [],
    }
    for _ in range(N_LAYERS):
        def proj():
            return {
                "w": _normal(nxt(), (D_MODEL, D_MODEL)),
                "a": _normal(nxt(), (D_MODEL, LORA_R), std=0.1),
                "b": _normal(nxt(), (LORA_R, D_MODEL), std=0.1),
                "bias": jnp.zeros((1, D_MODEL), jnp.float32),
            }
        layer = {
            "ln1_g": jnp.ones((1, D_MODEL), jnp.float32),
            "ln1_b": jnp.zeros((1, D_MODEL), jnp.float32),
            "ln2_g": jnp.ones((1, D_MODEL), jnp.float32),
            "ln2_b": jnp.zeros((1, D_MODEL), jnp.float32),
            "q": proj(), "k": proj(), "v": proj(), "o": proj(),
            "w1": _normal(nxt(), (D_MODEL, D_FFN)),
            "b1": jnp.zeros((1, D_FFN), jnp.float32),
            "w2": _normal(nxt(), (D_FFN, D_MODEL)),
            "b2": jnp.zeros((1, D_MODEL), jnp.float32),
        }
        params["layers"].append(layer)
    return params


def fold_and_stack(params):
    """One-time prep (exact, eval semantics):
       * fold LoRA into base weights (W' = W + alpha/r * A@B)
       * fuse Q|K|V into a single (D, 3D) projection
       * fold LN1/LN2 affine into the following projection
       * fold the attention 1/sqrt(hd) scale into the Q columns
       * stack per-layer params on a leading layer axis
    """
    def fold_lora(p):
        w = p["w"] + LORA_SCALING * jnp.dot(p["a"], p["b"])
        return w, p["bias"]

    keys = ["wqkv", "bqkv", "wo", "bo", "w1", "b1", "w2", "b2"]
    acc = {k: [] for k in keys}
    for lyr in params["layers"]:
        wq, bq = fold_lora(lyr["q"])
        wk, bk = fold_lora(lyr["k"])
        wv, bv = fold_lora(lyr["v"])
        wo_, bo_ = fold_lora(lyr["o"])

        # fold attention scale into Q
        wq = wq * ATTN_SCALE
        bq = bq * ATTN_SCALE

        wqkv = jnp.concatenate([wq, wk, wv], axis=1)          # (D, 3D)
        bqkv = jnp.concatenate([bq, bk, bv], axis=1)          # (1, 3D)

        # fold LN1 affine: (x_hat*g + b) @ W + c = x_hat @ (diag(g)W) + (b@W + c)
        g1, b1n = lyr["ln1_g"], lyr["ln1_b"]                  # (1, D)
        wqkv = wqkv * g1.reshape(D_MODEL, 1)
        bqkv = bqkv + jnp.dot(b1n, jnp.concatenate(
            [fold_lora(lyr["q"])[0] * ATTN_SCALE, fold_lora(lyr["k"])[0],
             fold_lora(lyr["v"])[0]], axis=1))

        # fold LN2 affine into MLP input projection
        g2, b2n = lyr["ln2_g"], lyr["ln2_b"]
        w1 = lyr["w1"] * g2.reshape(D_MODEL, 1)
        b1 = lyr["b1"] + jnp.dot(b2n, lyr["w1"])

        acc["wqkv"].append(wqkv); acc["bqkv"].append(bqkv)
        acc["wo"].append(wo_);    acc["bo"].append(bo_)
        acc["w1"].append(w1);     acc["b1"].append(b1)
        acc["w2"].append(lyr["w2"]); acc["b2"].append(lyr["b2"])

    stacked = {k: jnp.stack(v, axis=0) for k, v in acc.items()}
    stacked["lnf_g"] = params["ln_f_g"]
    stacked["lnf_b"] = params["ln_f_b"]
    stacked["embed"] = params["embed"]
    stacked["pos"] = params["pos"]
    return stacked


# ------------------------------ forward pass ---------------------------------
@jax.jit
def encode(stacked, input_ids, attention_mask):
    B, S = input_ids.shape
    M = B * S
    # glue: embedding lookups + mask prep stay in plain JAX
    h0 = jnp.take(stacked["embed"], input_ids, axis=0) + stacked["pos"][:S][None, :, :]

    # [M, M] additive attention bias:
    #   - block-diagonal (rows of different batch elements never attend to each other)
    #   - -1e9 on padded key positions (attention_mask == 0)
    key_bias = ((1.0 - attention_mask.astype(jnp.float32)) * NEG_INF).reshape(M)
    batch_of = jnp.arange(M, dtype=jnp.int32) // S
    block_bias = jnp.where(batch_of[:, None] == batch_of[None, :], 0.0, NEG_INF)
    mask2d = block_bias + key_bias[None, :]

    out2d = _fused_forward(h0.reshape(M, D_MODEL), mask2d, stacked)
    return out2d.reshape(B, S, D_MODEL)


def language_model_forward(stacked, inputs):
    """Mirror of LanguageModel.forward: list of input dicts -> list of last_hidden_state.

    All input dicts are stacked into one batch so the fused kernel launches once.
    """
    seq_lens = {d["input_ids"].shape[1] for d in inputs}
    assert len(seq_lens) == 1, "all input dicts must share the same sequence length"
    batch_sizes = [d["input_ids"].shape[0] for d in inputs]

    ids = jnp.concatenate([d["input_ids"] for d in inputs], axis=0)
    mask = jnp.concatenate([d["attention_mask"] for d in inputs], axis=0)
    out = encode(stacked, ids, mask)

    outputs, off = [], 0
    for b in batch_sizes:
        outputs.append(out[off:off + b])
        off += b
    return outputs


# ------------------------------ main ----------------------------------------
if __name__ == "__main__":
    key = jax.random.PRNGKey(0)
    k_params, k_ids1, k_ids2 = jax.random.split(key, 3)
    params = init_params(k_params)
    stacked = fold_and_stack(params)     # one-time LoRA/LN/scale fold + QKV fuse + layer stack

    B, S = 2, 8
    inputs = [
        {
            "input_ids": jax.random.randint(k_ids1, (B, S), 0, VOCAB, dtype=jnp.int32),
            "attention_mask": jnp.ones((B, S), jnp.int32),
        },
        {
            "input_ids": jax.random.randint(k_ids2, (B, S), 0, VOCAB, dtype=jnp.int32),
            # second sequence in the batch is padded after position 5
            "attention_mask": jnp.stack(
                [jnp.ones((S,), jnp.int32),
                 (jnp.arange(S) < 5).astype(jnp.int32)], axis=0),
        },
    ]

    outputs = language_model_forward(stacked, inputs)
    for o in outputs:
        jax.block_until_ready(o)
        assert o.shape == (B, S, D_MODEL)
        assert bool(jnp.all(jnp.isfinite(o)))
    print("KERNEL_OK")
</pallas_src>

<mosaic_0001>
module attributes {stable_mosaic.version = 11 : i64} {
  func.func @_fused_lm_kernel(%arg0: memref<32x32xf32, #tpu.memory_space<vmem>>, %arg1: memref<32x32xf32, #tpu.memory_space<vmem>>, %arg2: memref<2x32x96xf32, #tpu.memory_space<vmem>>, %arg3: memref<2x1x96xf32, #tpu.memory_space<vmem>>, %arg4: memref<2x32x32xf32, #tpu.memory_space<vmem>>, %arg5: memref<2x1x32xf32, #tpu.memory_space<vmem>>, %arg6: memref<2x32x64xf32, #tpu.memory_space<vmem>>, %arg7: memref<2x1x64xf32, #tpu.memory_space<vmem>>, %arg8: memref<2x64x32xf32, #tpu.memory_space<vmem>>, %arg9: memref<2x1x32xf32, #tpu.memory_space<vmem>>, %arg10: memref<1x32xf32, #tpu.memory_space<vmem>>, %arg11: memref<1x32xf32, #tpu.memory_space<vmem>>, %arg12: memref<32x32xf32, #tpu.memory_space<vmem>>) attributes {dimension_semantics = [], scalar_prefetch = 0 : i64, scratch_operands = 0 : i64, tpu.core_type = #tpu.core_type<tc>} {
    %c0 = arith.constant 0 : index
    %c0_0 = arith.constant 0 : index
    %0 = vector.load %arg0[%c0, %c0_0] : memref<32x32xf32, #tpu.memory_space<vmem>>, vector<32x32xf32>
    %c0_1 = arith.constant 0 : index
    %c0_2 = arith.constant 0 : index
    %1 = vector.load %arg1[%c0_1, %c0_2] : memref<32x32xf32, #tpu.memory_space<vmem>>, vector<32x32xf32>
    %cst = arith.constant dense<0.000000e+00> : vector<32xf32>
    %2 = vector.multi_reduction <add>, %0, %cst [1] : vector<32x32xf32> to vector<32xf32>
    %3 = vector.shape_cast %2 : vector<32xf32> to vector<32x1xf32>
    %cst_3 = arith.constant 3.200000e+01 : f32
    %4 = vector.broadcast %cst_3 : f32 to vector<32x1xf32>
    %5 = arith.divf %3, %4 : vector<32x1xf32>
    %6 = vector.broadcast %5 : vector<32x1xf32> to vector<32x32xf32>
    %7 = arith.subf %0, %6 : vector<32x32xf32>
    %8 = arith.mulf %7, %7 : vector<32x32xf32>
    %cst_4 = arith.constant dense<0.000000e+00> : vector<32xf32>
    %9 = vector.multi_reduction <add>, %8, %cst_4 [1] : vector<32x32xf32> to vector<32xf32>
    %10 = vector.shape_cast %9 : vector<32xf32> to vector<32x1xf32>
    %cst_5 = arith.constant 3.200000e+01 : f32
    %11 = vector.broadcast %cst_5 : f32 to vector<32x1xf32>
    %12 = arith.divf %10, %11 : vector<32x1xf32>
    %cst_6 = arith.constant 9.99999974E-6 : f32
    %13 = vector.broadcast %cst_6 : f32 to vector<32x1xf32>
    %14 = arith.addf %12, %13 : vector<32x1xf32>
    %15 = math.rsqrt %14 : vector<32x1xf32>
    %16 = vector.broadcast %15 : vector<32x1xf32> to vector<32x32xf32>
    %17 = arith.mulf %7, %16 : vector<32x32xf32>
    %c0_7 = arith.constant 0 : index
    %c0_8 = arith.constant 0 : index
    %c0_9 = arith.constant 0 : index
    %18 = vector.load %arg2[%c0_7, %c0_8, %c0_9] : memref<2x32x96xf32, #tpu.memory_space<vmem>>, vector<1x32x96xf32>
    %19 = vector.shape_cast %18 : vector<1x32x96xf32> to vector<32x96xf32>
    %cst_10 = arith.constant dense<0.000000e+00> : vector<32x96xf32>
    %20 = tpu.matmul %17, %19, %cst_10 {dimension_numbers = #tpu.dot_dimension_numbers<[1], [0], [0], [1], [0, 0, 1, 1], [], []>} : vector<32x32xf32>, vector<32x96xf32>, vector<32x96xf32> -> vector<32x96xf32>
    %c0_11 = arith.constant 0 : index
    %c0_12 = arith.constant 0 : index
    %c0_13 = arith.constant 0 : index
    %21 = vector.load %arg3[%c0_11, %c0_12, %c0_13] : memref<2x1x96xf32, #tpu.memory_space<vmem>>, vector<1x1x96xf32>
    %22 = vector.shape_cast %21 : vector<1x1x96xf32> to vector<1x96xf32>
    %23 = vector.broadcast %22 : vector<1x96xf32> to vector<32x96xf32>
    %24 = arith.addf %20, %23 : vector<32x96xf32>
    %25 = vector.extract_strided_slice %24 {offsets = [0, 0], sizes = [32, 32], strides = [1, 1]} : vector<32x96xf32> to vector<32x32xf32>
    %26 = vector.extract_strided_slice %24 {offsets = [0, 32], sizes = [32, 32], strides = [1, 1]} : vector<32x96xf32> to vector<32x32xf32>
    %27 = vector.extract_strided_slice %24 {offsets = [0, 64], sizes = [32, 32], strides = [1, 1]} : vector<32x96xf32> to vector<32x32xf32>
    %28 = vector.extract_strided_slice %25 {offsets = [0, 0], sizes = [32, 8], strides = [1, 1]} : vector<32x32xf32> to vector<32x8xf32>
    %29 = vector.extract_strided_slice %26 {offsets = [0, 0], sizes = [32, 8], strides = [1, 1]} : vector<32x32xf32> to vector<32x8xf32>
    %30 = vector.extract_strided_slice %27 {offsets = [0, 0], sizes = [32, 8], strides = [1, 1]} : vector<32x32xf32> to vector<32x8xf32>
    %cst_14 = arith.constant dense<0.000000e+00> : vector<32x32xf32>
    %31 = tpu.matmul %28, %29, %cst_14 {dimension_numbers = #tpu.dot_dimension_numbers<[1], [1], [0], [0], [0, 0, 1, 0], [], []>} : vector<32x8xf32>, vector<32x8xf32>, vector<32x32xf32> -> vector<32x32xf32>
    %32 = arith.addf %31, %1 : vector<32x32xf32>
    %cst_15 = arith.constant dense<0xFF800000> : vector<32xf32>
    %33 = vector.multi_reduction <maximumf>, %32, %cst_15 [1] : vector<32x32xf32> to vector<32xf32>
    %34 = vector.shape_cast %33 : vector<32xf32> to vector<32x1xf32>
    %35 = vector.broadcast %34 : vector<32x1xf32> to vector<32x32xf32>
    %36 = arith.subf %32, %35 : vector<32x32xf32>
    %37 = math.exp %36 : vector<32x32xf32>
    %cst_16 = arith.constant dense<0.000000e+00> : vector<32xf32>
    %38 = vector.multi_reduction <add>, %37, %cst_16 [1] : vector<32x32xf32> to vector<32xf32>
    %39 = vector.shape_cast %38 : vector<32xf32> to vector<32x1xf32>
    %40 = tpu.reciprocal %39 {approx = true} : vector<32x1xf32> -> vector<32x1xf32>
    %41 = vector.broadcast %40 : vector<32x1xf32> to vector<32x32xf32>
    %42 = arith.mulf %37, %41 : vector<32x32xf32>
    %cst_17 = arith.constant dense<0.000000e+00> : vector<32x8xf32>
    %43 = tpu.matmul %42, %30, %cst_17 {dimension_numbers = #tpu.dot_dimension_numbers<[1], [0], [0], [1], [0, 0, 1, 1], [], []>} : vector<32x32xf32>, vector<32x8xf32>, vector<32x8xf32> -> vector<32x8xf32>
    %44 = vector.extract_strided_slice %25 {offsets = [0, 8], sizes = [32, 8], strides = [1, 1]} : vector<32x32xf32> to vector<32x8xf32>
    %45 = vector.extract_strided_slice %26 {offsets = [0, 8], sizes = [32, 8], strides = [1, 1]} : vector<32x32xf32> to vector<32x8xf32>
    %46 = vector.extract_strided_slice %27 {offsets = [0, 8], sizes = [32, 8], strides = [1, 1]} : vector<32x32xf32> to vector<32x8xf32>
    %cst_18 = arith.constant dense<0.000000e+00> : vector<32x32xf32>
    %47 = tpu.matmul %44, %45, %cst_18 {dimension_numbers = #tpu.dot_dimension_numbers<[1], [1], [0], [0], [0, 0, 1, 0], [], []>} : vector<32x8xf32>, vector<32x8xf32>, vector<32x32xf32> -> vector<32x32xf32>
    %48 = arith.addf %47, %1 : vector<32x32xf32>
    %cst_19 = arith.constant dense<0xFF800000> : vector<32xf32>
    %49 = vector.multi_reduction <maximumf>, %48, %cst_19 [1] : vector<32x32xf32> to vector<32xf32>
    %50 = vector.shape_cast %49 : vector<32xf32> to vector<32x1xf32>
    %51 = vector.broadcast %50 : vector<32x1xf32> to vector<32x32xf32>
    %52 = arith.subf %48, %51 : vector<32x32xf32>
    %53 = math.exp %52 : vector<32x32xf32>
    %cst_20 = arith.constant dense<0.000000e+00> : vector<32xf32>
    %54 = vector.multi_reduction <add>, %53, %cst_20 [1] : vector<32x32xf32> to vector<32xf32>
    %55 = vector.shape_cast %54 : vector<32xf32> to vector<32x1xf32>
    %56 = tpu.reciprocal %55 {approx = true} : vector<32x1xf32> -> vector<32x1xf32>
    %57 = vector.broadcast %56 : vector<32x1xf32> to vector<32x32xf32>
    %58 = arith.mulf %53, %57 : vector<32x32xf32>
    %cst_21 = arith.constant dense<0.000000e+00> : vector<32x8xf32>
    %59 = tpu.matmul %58, %46, %cst_21 {dimension_numbers = #tpu.dot_dimension_numbers<[1], [0], [0], [1], [0, 0, 1, 1], [], []>} : vector<32x32xf32>, vector<32x8xf32>, vector<32x8xf32> -> vector<32x8xf32>
    %60 = vector.extract_strided_slice %25 {offsets = [0, 16], sizes = [32, 8], strides = [1, 1]} : vector<32x32xf32> to vector<32x8xf32>
    %61 = vector.extract_strided_slice %26 {offsets = [0, 16], sizes = [32, 8], strides = [1, 1]} : vector<32x32xf32> to vector<32x8xf32>
    %62 = vector.extract_strided_slice %27 {offsets = [0, 16], sizes = [32, 8], strides = [1, 1]} : vector<32x32xf32> to vector<32x8xf32>
    %cst_22 = arith.constant dense<0.000000e+00> : vector<32x32xf32>
    %63 = tpu.matmul %60, %61, %cst_22 {dimension_numbers = #tpu.dot_dimension_numbers<[1], [1], [0], [0], [0, 0, 1, 0], [], []>} : vector<32x8xf32>, vector<32x8xf32>, vector<32x32xf32> -> vector<32x32xf32>
    %64 = arith.addf %63, %1 : vector<32x32xf32>
    %cst_23 = arith.constant dense<0xFF800000> : vector<32xf32>
    %65 = vector.multi_reduction <maximumf>, %64, %cst_23 [1] : vector<32x32xf32> to vector<32xf32>
    %66 = vector.shape_cast %65 : vector<32xf32> to vector<32x1xf32>
    %67 = vector.broadcast %66 : vector<32x1xf32> to vector<32x32xf32>
    %68 = arith.subf %64, %67 : vector<32x32xf32>
    %69 = math.exp %68 : vector<32x32xf32>
    %cst_24 = arith.constant dense<0.000000e+00> : vector<32xf32>
    %70 = vector.multi_reduction <add>, %69, %cst_24 [1] : vector<32x32xf32> to vector<32xf32>
    %71 = vector.shape_cast %70 : vector<32xf32> to vector<32x1xf32>
    %72 = tpu.reciprocal %71 {approx = true} : vector<32x1xf32> -> vector<32x1xf32>
    %73 = vector.broadcast %72 : vector<32x1xf32> to vector<32x32xf32>
    %74 = arith.mulf %69, %73 : vector<32x32xf32>
    %cst_25 = arith.constant dense<0.000000e+00> : vector<32x8xf32>
    %75 = tpu.matmul %74, %62, %cst_25 {dimension_numbers = #tpu.dot_dimension_numbers<[1], [0], [0], [1], [0, 0, 1, 1], [], []>} : vector<32x32xf32>, vector<32x8xf32>, vector<32x8xf32> -> vector<32x8xf32>
    %76 = vector.extract_strided_slice %25 {offsets = [0, 24], sizes = [32, 8], strides = [1, 1]} : vector<32x32xf32> to vector<32x8xf32>
    %77 = vector.extract_strided_slice %26 {offsets = [0, 24], sizes = [32, 8], strides = [1, 1]} : vector<32x32xf32> to vector<32x8xf32>
    %78 = vector.extract_strided_slice %27 {offsets = [0, 24], sizes = [32, 8], strides = [1, 1]} : vector<32x32xf32> to vector<32x8xf32>
    %cst_26 = arith.constant dense<0.000000e+00> : vector<32x32xf32>
    %79 = tpu.matmul %76, %77, %cst_26 {dimension_numbers = #tpu.dot_dimension_numbers<[1], [1], [0], [0], [0, 0, 1, 0], [], []>} : vector<32x8xf32>, vector<32x8xf32>, vector<32x32xf32> -> vector<32x32xf32>
    %80 = arith.addf %79, %1 : vector<32x32xf32>
    %cst_27 = arith.constant dense<0xFF800000> : vector<32xf32>
    %81 = vector.multi_reduction <maximumf>, %80, %cst_27 [1] : vector<32x32xf32> to vector<32xf32>
    %82 = vector.shape_cast %81 : vector<32xf32> to vector<32x1xf32>
    %83 = vector.broadcast %82 : vector<32x1xf32> to vector<32x32xf32>
    %84 = arith.subf %80, %83 : vector<32x32xf32>
    %85 = math.exp %84 : vector<32x32xf32>
    %cst_28 = arith.constant dense<0.000000e+00> : vector<32xf32>
    %86 = vector.multi_reduction <add>, %85, %cst_28 [1] : vector<32x32xf32> to vector<32xf32>
    %87 = vector.shape_cast %86 : vector<32xf32> to vector<32x1xf32>
    %88 = tpu.reciprocal %87 {approx = true} : vector<32x1xf32> -> vector<32x1xf32>
    %89 = vector.broadcast %88 : vector<32x1xf32> to vector<32x32xf32>
    %90 = arith.mulf %85, %89 : vector<32x32xf32>
    %cst_29 = arith.constant dense<0.000000e+00> : vector<32x8xf32>
    %91 = tpu.matmul %90, %78, %cst_29 {dimension_numbers = #tpu.dot_dimension_numbers<[1], [0], [0], [1], [0, 0, 1, 1], [], []>} : vector<32x32xf32>, vector<32x8xf32>, vector<32x8xf32> -> vector<32x8xf32>
    %92 = tpu.concatenate %43, %59, %75, %91 in 1 : vector<32x8xf32>, vector<32x8xf32>, vector<32x8xf32>, vector<32x8xf32> -> vector<32x32xf32>
    %c0_30 = arith.constant 0 : index
    %c0_31 = arith.constant 0 : index
    %c0_32 = arith.constant 0 : index
    %93 = vector.load %arg4[%c0_30, %c0_31, %c0_32] : memref<2x32x32xf32, #tpu.memory_space<vmem>>, vector<1x32x32xf32>
    %94 = vector.shape_cast %93 : vector<1x32x32xf32> to vector<32x32xf32>
    %cst_33 = arith.constant dense<0.000000e+00> : vector<32x32xf32>
    %95 = tpu.matmul %92, %94, %cst_33 {dimension_numbers = #tpu.dot_dimension_numbers<[1], [0], [0], [1], [0, 0, 1, 1], [], []>} : vector<32x32xf32>, vector<32x32xf32>, vector<32x32xf32> -> vector<32x32xf32>
    %c0_34 = arith.constant 0 : index
    %c0_35 = arith.constant 0 : index
    %c0_36 = arith.constant 0 : index
    %96 = vector.load %arg5[%c0_34, %c0_35, %c0_36] : memref<2x1x32xf32, #tpu.memory_space<vmem>>, vector<1x1x32xf32>
    %97 = vector.shape_cast %96 : vector<1x1x32xf32> to vector<1x32xf32>
    %98 = vector.broadcast %97 : vector<1x32xf32> to vector<32x32xf32>
    %99 = arith.addf %95, %98 : vector<32x32xf32>
    %100 = arith.addf %0, %99 : vector<32x32xf32>
    %cst_37 = arith.constant dense<0.000000e+00> : vector<32xf32>
    %101 = vector.multi_reduction <add>, %100, %cst_37 [1] : vector<32x32xf32> to vector<32xf32>
    %102 = vector.shape_cast %101 : vector<32xf32> to vector<32x1xf32>
    %cst_38 = arith.constant 3.200000e+01 : f32
    %103 = vector.broadcast %cst_38 : f32 to vector<32x1xf32>
    %104 = arith.divf %102, %103 : vector<32x1xf32>
    %105 = vector.broadcast %104 : vector<32x1xf32> to vector<32x32xf32>
    %106 = arith.subf %100, %105 : vector<32x32xf32>
    %107 = arith.mulf %106, %106 : vector<32x32xf32>
    %cst_39 = arith.constant dense<0.000000e+00> : vector<32xf32>
    %108 = vector.multi_reduction <add>, %107, %cst_39 [1] : vector<32x32xf32> to vector<32xf32>
    %109 = vector.shape_cast %108 : vector<32xf32> to vector<32x1xf32>
    %cst_40 = arith.constant 3.200000e+01 : f32
    %110 = vector.broadcast %cst_40 : f32 to vector<32x1xf32>
    %111 = arith.divf %109, %110 : vector<32x1xf32>
    %cst_41 = arith.constant 9.99999974E-6 : f32
    %112 = vector.broadcast %cst_41 : f32 to vector<32x1xf32>
    %113 = arith.addf %111, %112 : vector<32x1xf32>
    %114 = math.rsqrt %113 : vector<32x1xf32>
    %115 = vector.broadcast %114 : vector<32x1xf32> to vector<32x32xf32>
    %116 = arith.mulf %106, %115 : vector<32x32xf32>
    %c0_42 = arith.constant 0 : index
    %c0_43 = arith.constant 0 : index
    %c0_44 = arith.constant 0 : index
    %117 = vector.load %arg6[%c0_42, %c0_43, %c0_44] : memref<2x32x64xf32, #tpu.memory_space<vmem>>, vector<1x32x64xf32>
    %118 = vector.shape_cast %117 : vector<1x32x64xf32> to vector<32x64xf32>
    %cst_45 = arith.constant dense<0.000000e+00> : vector<32x64xf32>
    %119 = tpu.matmul %116, %118, %cst_45 {dimension_numbers = #tpu.dot_dimension_numbers<[1], [0], [0], [1], [0, 0, 1, 1], [], []>} : vector<32x32xf32>, vector<32x64xf32>, vector<32x64xf32> -> vector<32x64xf32>
    %c0_46 = arith.constant 0 : index
    %c0_47 = arith.constant 0 : index
    %c0_48 = arith.constant 0 : index
    %120 = vector.load %arg7[%c0_46, %c0_47, %c0_48] : memref<2x1x64xf32, #tpu.memory_space<vmem>>, vector<1x1x64xf32>
    %121 = vector.shape_cast %120 : vector<1x1x64xf32> to vector<1x64xf32>
    %122 = vector.broadcast %121 : vector<1x64xf32> to vector<32x64xf32>
    %123 = arith.addf %119, %122 : vector<32x64xf32>
    %124 = arith.mulf %123, %123 : vector<32x64xf32>
    %125 = arith.mulf %123, %124 : vector<32x64xf32>
    %cst_49 = arith.constant 4.471500e-02 : f32
    %126 = vector.broadcast %cst_49 : f32 to vector<32x64xf32>
    %127 = arith.mulf %126, %125 : vector<32x64xf32>
    %128 = arith.addf %123, %127 : vector<32x64xf32>
    %cst_50 = arith.constant 0.797884583 : f32
    %129 = vector.broadcast %cst_50 : f32 to vector<32x64xf32>
    %130 = arith.mulf %129, %128 : vector<32x64xf32>
    %131 = math.tanh %130 : vector<32x64xf32>
    %cst_51 = arith.constant 1.000000e+00 : f32
    %132 = vector.broadcast %cst_51 : f32 to vector<32x64xf32>
    %133 = arith.addf %132, %131 : vector<32x64xf32>
    %cst_52 = arith.constant 5.000000e-01 : f32
    %134 = vector.broadcast %cst_52 : f32 to vector<32x64xf32>
    %135 = arith.mulf %134, %133 : vector<32x64xf32>
    %136 = arith.mulf %123, %135 : vector<32x64xf32>
    %c0_53 = arith.constant 0 : index
    %c0_54 = arith.constant 0 : index
    %c0_55 = arith.constant 0 : index
    %137 = vector.load %arg8[%c0_53, %c0_54, %c0_55] : memref<2x64x32xf32, #tpu.memory_space<vmem>>, vector<1x64x32xf32>
    %138 = vector.shape_cast %137 : vector<1x64x32xf32> to vector<64x32xf32>
    %cst_56 = arith.constant dense<0.000000e+00> : vector<32x32xf32>
    %139 = tpu.matmul %136, %138, %cst_56 {dimension_numbers = #tpu.dot_dimension_numbers<[1], [0], [0], [1], [0, 0, 1, 1], [], []>} : vector<32x64xf32>, vector<64x32xf32>, vector<32x32xf32> -> vector<32x32xf32>
    %c0_57 = arith.constant 0 : index
    %c0_58 = arith.constant 0 : index
    %c0_59 = arith.constant 0 : index
    %140 = vector.load %arg9[%c0_57, %c0_58, %c0_59] : memref<2x1x32xf32, #tpu.memory_space<vmem>>, vector<1x1x32xf32>
    %141 = vector.shape_cast %140 : vector<1x1x32xf32> to vector<1x32xf32>
    %142 = vector.broadcast %141 : vector<1x32xf32> to vector<32x32xf32>
    %143 = arith.addf %139, %142 : vector<32x32xf32>
    %144 = arith.addf %100, %143 : vector<32x32xf32>
    %cst_60 = arith.constant dense<0.000000e+00> : vector<32xf32>
    %145 = vector.multi_reduction <add>, %144, %cst_60 [1] : vector<32x32xf32> to vector<32xf32>
    %146 = vector.shape_cast %145 : vector<32xf32> to vector<32x1xf32>
    %cst_61 = arith.constant 3.200000e+01 : f32
    %147 = vector.broadcast %cst_61 : f32 to vector<32x1xf32>
    %148 = arith.divf %146, %147 : vector<32x1xf32>
    %149 = vector.broadcast %148 : vector<32x1xf32> to vector<32x32xf32>
    %150 = arith.subf %144, %149 : vector<32x32xf32>
    %151 = arith.mulf %150, %150 : vector<32x32xf32>
    %cst_62 = arith.constant dense<0.000000e+00> : vector<32xf32>
    %152 = vector.multi_reduction <add>, %151, %cst_62 [1] : vector<32x32xf32> to vector<32xf32>
    %153 = vector.shape_cast %152 : vector<32xf32> to vector<32x1xf32>
    %cst_63 = arith.constant 3.200000e+01 : f32
    %154 = vector.broadcast %cst_63 : f32 to vector<32x1xf32>
    %155 = arith.divf %153, %154 : vector<32x1xf32>
    %cst_64 = arith.constant 9.99999974E-6 : f32
    %156 = vector.broadcast %cst_64 : f32 to vector<32x1xf32>
    %157 = arith.addf %155, %156 : vector<32x1xf32>
    %158 = math.rsqrt %157 : vector<32x1xf32>
    %159 = vector.broadcast %158 : vector<32x1xf32> to vector<32x32xf32>
    %160 = arith.mulf %150, %159 : vector<32x32xf32>
    %c1 = arith.constant 1 : index
    %c0_65 = arith.constant 0 : index
    %c0_66 = arith.constant 0 : index
    %161 = vector.load %arg2[%c1, %c0_65, %c0_66] : memref<2x32x96xf32, #tpu.memory_space<vmem>>, vector<1x32x96xf32>
    %162 = vector.shape_cast %161 : vector<1x32x96xf32> to vector<32x96xf32>
    %cst_67 = arith.constant dense<0.000000e+00> : vector<32x96xf32>
    %163 = tpu.matmul %160, %162, %cst_67 {dimension_numbers = #tpu.dot_dimension_numbers<[1], [0], [0], [1], [0, 0, 1, 1], [], []>} : vector<32x32xf32>, vector<32x96xf32>, vector<32x96xf32> -> vector<32x96xf32>
    %c1_68 = arith.constant 1 : index
    %c0_69 = arith.constant 0 : index
    %c0_70 = arith.constant 0 : index
    %164 = vector.load %arg3[%c1_68, %c0_69, %c0_70] : memref<2x1x96xf32, #tpu.memory_space<vmem>>, vector<1x1x96xf32>
    %165 = vector.shape_cast %164 : vector<1x1x96xf32> to vector<1x96xf32>
    %166 = vector.broadcast %165 : vector<1x96xf32> to vector<32x96xf32>
    %167 = arith.addf %163, %166 : vector<32x96xf32>
    %168 = vector.extract_strided_slice %167 {offsets = [0, 0], sizes = [32, 32], strides = [1, 1]} : vector<32x96xf32> to vector<32x32xf32>
    %169 = vector.extract_strided_slice %167 {offsets = [0, 32], sizes = [32, 32], strides = [1, 1]} : vector<32x96xf32> to vector<32x32xf32>
    %170 = vector.extract_strided_slice %167 {offsets = [0, 64], sizes = [32, 32], strides = [1, 1]} : vector<32x96xf32> to vector<32x32xf32>
    %171 = vector.extract_strided_slice %168 {offsets = [0, 0], sizes = [32, 8], strides = [1, 1]} : vector<32x32xf32> to vector<32x8xf32>
    %172 = vector.extract_strided_slice %169 {offsets = [0, 0], sizes = [32, 8], strides = [1, 1]} : vector<32x32xf32> to vector<32x8xf32>
    %173 = vector.extract_strided_slice %170 {offsets = [0, 0], sizes = [32, 8], strides = [1, 1]} : vector<32x32xf32> to vector<32x8xf32>
    %cst_71 = arith.constant dense<0.000000e+00> : vector<32x32xf32>
    %174 = tpu.matmul %171, %172, %cst_71 {dimension_numbers = #tpu.dot_dimension_numbers<[1], [1], [0], [0], [0, 0, 1, 0], [], []>} : vector<32x8xf32>, vector<32x8xf32>, vector<32x32xf32> -> vector<32x32xf32>
    %175 = arith.addf %174, %1 : vector<32x32xf32>
    %cst_72 = arith.constant dense<0xFF800000> : vector<32xf32>
    %176 = vector.multi_reduction <maximumf>, %175, %cst_72 [1] : vector<32x32xf32> to vector<32xf32>
    %177 = vector.shape_cast %176 : vector<32xf32> to vector<32x1xf32>
    %178 = vector.broadcast %177 : vector<32x1xf32> to vector<32x32xf32>
    %179 = arith.subf %175, %178 : vector<32x32xf32>
    %180 = math.exp %179 : vector<32x32xf32>
    %cst_73 = arith.constant dense<0.000000e+00> : vector<32xf32>
    %181 = vector.multi_reduction <add>, %180, %cst_73 [1] : vector<32x32xf32> to vector<32xf32>
    %182 = vector.shape_cast %181 : vector<32xf32> to vector<32x1xf32>
    %183 = tpu.reciprocal %182 {approx = true} : vector<32x1xf32> -> vector<32x1xf32>
    %184 = vector.broadcast %183 : vector<32x1xf32> to vector<32x32xf32>
    %185 = arith.mulf %180, %184 : vector<32x32xf32>
    %cst_74 = arith.constant dense<0.000000e+00> : vector<32x8xf32>
    %186 = tpu.matmul %185, %173, %cst_74 {dimension_numbers = #tpu.dot_dimension_numbers<[1], [0], [0], [1], [0, 0, 1, 1], [], []>} : vector<32x32xf32>, vector<32x8xf32>, vector<32x8xf32> -> vector<32x8xf32>
    %187 = vector.extract_strided_slice %168 {offsets = [0, 8], sizes = [32, 8], strides = [1, 1]} : vector<32x32xf32> to vector<32x8xf32>
    %188 = vector.extract_strided_slice %169 {offsets = [0, 8], sizes = [32, 8], strides = [1, 1]} : vector<32x32xf32> to vector<32x8xf32>
    %189 = vector.extract_strided_slice %170 {offsets = [0, 8], sizes = [32, 8], strides = [1, 1]} : vector<32x32xf32> to vector<32x8xf32>
    %cst_75 = arith.constant dense<0.000000e+00> : vector<32x32xf32>
    %190 = tpu.matmul %187, %188, %cst_75 {dimension_numbers = #tpu.dot_dimension_numbers<[1], [1], [0], [0], [0, 0, 1, 0], [], []>} : vector<32x8xf32>, vector<32x8xf32>, vector<32x32xf32> -> vector<32x32xf32>
    %191 = arith.addf %190, %1 : vector<32x32xf32>
    %cst_76 = arith.constant dense<0xFF800000> : vector<32xf32>
    %192 = vector.multi_reduction <maximumf>, %191, %cst_76 [1] : vector<32x32xf32> to vector<32xf32>
    %193 = vector.shape_cast %192 : vector<32xf32> to vector<32x1xf32>
    %194 = vector.broadcast %193 : vector<32x1xf32> to vector<32x32xf32>
    %195 = arith.subf %191, %194 : vector<32x32xf32>
    %196 = math.exp %195 : vector<32x32xf32>
    %cst_77 = arith.constant dense<0.000000e+00> : vector<32xf32>
    %197 = vector.multi_reduction <add>, %196, %cst_77 [1] : vector<32x32xf32> to vector<32xf32>
    %198 = vector.shape_cast %197 : vector<32xf32> to vector<32x1xf32>
    %199 = tpu.reciprocal %198 {approx = true} : vector<32x1xf32> -> vector<32x1xf32>
    %200 = vector.broadcast %199 : vector<32x1xf32> to vector<32x32xf32>
    %201 = arith.mulf %196, %200 : vector<32x32xf32>
    %cst_78 = arith.constant dense<0.000000e+00> : vector<32x8xf32>
    %202 = tpu.matmul %201, %189, %cst_78 {dimension_numbers = #tpu.dot_dimension_numbers<[1], [0], [0], [1], [0, 0, 1, 1], [], []>} : vector<32x32xf32>, vector<32x8xf32>, vector<32x8xf32> -> vector<32x8xf32>
    %203 = vector.extract_strided_slice %168 {offsets = [0, 16], sizes = [32, 8], strides = [1, 1]} : vector<32x32xf32> to vector<32x8xf32>
    %204 = vector.extract_strided_slice %169 {offsets = [0, 16], sizes = [32, 8], strides = [1, 1]} : vector<32x32xf32> to vector<32x8xf32>
    %205 = vector.extract_strided_slice %170 {offsets = [0, 16], sizes = [32, 8], strides = [1, 1]} : vector<32x32xf32> to vector<32x8xf32>
    %cst_79 = arith.constant dense<0.000000e+00> : vector<32x32xf32>
    %206 = tpu.matmul %203, %204, %cst_79 {dimension_numbers = #tpu.dot_dimension_numbers<[1], [1], [0], [0], [0, 0, 1, 0], [], []>} : vector<32x8xf32>, vector<32x8xf32>, vector<32x32xf32> -> vector<32x32xf32>
    %207 = arith.addf %206, %1 : vector<32x32xf32>
    %cst_80 = arith.constant dense<0xFF800000> : vector<32xf32>
    %208 = vector.multi_reduction <maximumf>, %207, %cst_80 [1] : vector<32x32xf32> to vector<32xf32>
    %209 = vector.shape_cast %208 : vector<32xf32> to vector<32x1xf32>
    %210 = vector.broadcast %209 : vector<32x1xf32> to vector<32x32xf32>
    %211 = arith.subf %207, %210 : vector<32x32xf32>
    %212 = math.exp %211 : vector<32x32xf32>
    %cst_81 = arith.constant dense<0.000000e+00> : vector<32xf32>
    %213 = vector.multi_reduction <add>, %212, %cst_81 [1] : vector<32x32xf32> to vector<32xf32>
    %214 = vector.shape_cast %213 : vector<32xf32> to vector<32x1xf32>
    %215 = tpu.reciprocal %214 {approx = true} : vector<32x1xf32> -> vector<32x1xf32>
    %216 = vector.broadcast %215 : vector<32x1xf32> to vector<32x32xf32>
    %217 = arith.mulf %212, %216 : vector<32x32xf32>
    %cst_82 = arith.constant dense<0.000000e+00> : vector<32x8xf32>
    %218 = tpu.matmul %217, %205, %cst_82 {dimension_numbers = #tpu.dot_dimension_numbers<[1], [0], [0], [1], [0, 0, 1, 1], [], []>} : vector<32x32xf32>, vector<32x8xf32>, vector<32x8xf32> -> vector<32x8xf32>
    %219 = vector.extract_strided_slice %168 {offsets = [0, 24], sizes = [32, 8], strides = [1, 1]} : vector<32x32xf32> to vector<32x8xf32>
    %220 = vector.extract_strided_slice %169 {offsets = [0, 24], sizes = [32, 8], strides = [1, 1]} : vector<32x32xf32> to vector<32x8xf32>
    %221 = vector.extract_strided_slice %170 {offsets = [0, 24], sizes = [32, 8], strides = [1, 1]} : vector<32x32xf32> to vector<32x8xf32>
    %cst_83 = arith.constant dense<0.000000e+00> : vector<32x32xf32>
    %222 = tpu.matmul %219, %220, %cst_83 {dimension_numbers = #tpu.dot_dimension_numbers<[1], [1], [0], [0], [0, 0, 1, 0], [], []>} : vector<32x8xf32>, vector<32x8xf32>, vector<32x32xf32> -> vector<32x32xf32>
    %223 = arith.addf %222, %1 : vector<32x32xf32>
    %cst_84 = arith.constant dense<0xFF800000> : vector<32xf32>
    %224 = vector.multi_reduction <maximumf>, %223, %cst_84 [1] : vector<32x32xf32> to vector<32xf32>
    %225 = vector.shape_cast %224 : vector<32xf32> to vector<32x1xf32>
    %226 = vector.broadcast %225 : vector<32x1xf32> to vector<32x32xf32>
    %227 = arith.subf %223, %226 : vector<32x32xf32>
    %228 = math.exp %227 : vector<32x32xf32>
    %cst_85 = arith.constant dense<0.000000e+00> : vector<32xf32>
    %229 = vector.multi_reduction <add>, %228, %cst_85 [1] : vector<32x32xf32> to vector<32xf32>
    %230 = vector.shape_cast %229 : vector<32xf32> to vector<32x1xf32>
    %231 = tpu.reciprocal %230 {approx = true} : vector<32x1xf32> -> vector<32x1xf32>
    %232 = vector.broadcast %231 : vector<32x1xf32> to vector<32x32xf32>
    %233 = arith.mulf %228, %232 : vector<32x32xf32>
    %cst_86 = arith.constant dense<0.000000e+00> : vector<32x8xf32>
    %234 = tpu.matmul %233, %221, %cst_86 {dimension_numbers = #tpu.dot_dimension_numbers<[1], [0], [0], [1], [0, 0, 1, 1], [], []>} : vector<32x32xf32>, vector<32x8xf32>, vector<32x8xf32> -> vector<32x8xf32>
    %235 = tpu.concatenate %186, %202, %218, %234 in 1 : vector<32x8xf32>, vector<32x8xf32>, vector<32x8xf32>, vector<32x8xf32> -> vector<32x32xf32>
    %c1_87 = arith.constant 1 : index
    %c0_88 = arith.constant 0 : index
    %c0_89 = arith.constant 0 : index
    %236 = vector.load %arg4[%c1_87, %c0_88, %c0_89] : memref<2x32x32xf32, #tpu.memory_space<vmem>>, vector<1x32x32xf32>
    %237 = vector.shape_cast %236 : vector<1x32x32xf32> to vector<32x32xf32>
    %cst_90 = arith.constant dense<0.000000e+00> : vector<32x32xf32>
    %238 = tpu.matmul %235, %237, %cst_90 {dimension_numbers = #tpu.dot_dimension_numbers<[1], [0], [0], [1], [0, 0, 1, 1], [], []>} : vector<32x32xf32>, vector<32x32xf32>, vector<32x32xf32> -> vector<32x32xf32>
    %c1_91 = arith.constant 1 : index
    %c0_92 = arith.constant 0 : index
    %c0_93 = arith.constant 0 : index
    %239 = vector.load %arg5[%c1_91, %c0_92, %c0_93] : memref<2x1x32xf32, #tpu.memory_space<vmem>>, vector<1x1x32xf32>
    %240 = vector.shape_cast %239 : vector<1x1x32xf32> to vector<1x32xf32>
    %241 = vector.broadcast %240 : vector<1x32xf32> to vector<32x32xf32>
    %242 = arith.addf %238, %241 : vector<32x32xf32>
    %243 = arith.addf %144, %242 : vector<32x32xf32>
    %cst_94 = arith.constant dense<0.000000e+00> : vector<32xf32>
    %244 = vector.multi_reduction <add>, %243, %cst_94 [1] : vector<32x32xf32> to vector<32xf32>
    %245 = vector.shape_cast %244 : vector<32xf32> to vector<32x1xf32>
    %cst_95 = arith.constant 3.200000e+01 : f32
    %246 = vector.broadcast %cst_95 : f32 to vector<32x1xf32>
    %247 = arith.divf %245, %246 : vector<32x1xf32>
    %248 = vector.broadcast %247 : vector<32x1xf32> to vector<32x32xf32>
    %249 = arith.subf %243, %248 : vector<32x32xf32>
    %250 = arith.mulf %249, %249 : vector<32x32xf32>
    %cst_96 = arith.constant dense<0.000000e+00> : vector<32xf32>
    %251 = vector.multi_reduction <add>, %250, %cst_96 [1] : vector<32x32xf32> to vector<32xf32>
    %252 = vector.shape_cast %251 : vector<32xf32> to vector<32x1xf32>
    %cst_97 = arith.constant 3.200000e+01 : f32
    %253 = vector.broadcast %cst_97 : f32 to vector<32x1xf32>
    %254 = arith.divf %252, %253 : vector<32x1xf32>
    %cst_98 = arith.constant 9.99999974E-6 : f32
    %255 = vector.broadcast %cst_98 : f32 to vector<32x1xf32>
    %256 = arith.addf %254, %255 : vector<32x1xf32>
    %257 = math.rsqrt %256 : vector<32x1xf32>
    %258 = vector.broadcast %257 : vector<32x1xf32> to vector<32x32xf32>
    %259 = arith.mulf %249, %258 : vector<32x32xf32>
    %c1_99 = arith.constant 1 : index
    %c0_100 = arith.constant 0 : index
    %c0_101 = arith.constant 0 : index
    %260 = vector.load %arg6[%c1_99, %c0_100, %c0_101] : memref<2x32x64xf32, #tpu.memory_space<vmem>>, vector<1x32x64xf32>
    %261 = vector.shape_cast %260 : vector<1x32x64xf32> to vector<32x64xf32>
    %cst_102 = arith.constant dense<0.000000e+00> : vector<32x64xf32>
    %262 = tpu.matmul %259, %261, %cst_102 {dimension_numbers = #tpu.dot_dimension_numbers<[1], [0], [0], [1], [0, 0, 1, 1], [], []>} : vector<32x32xf32>, vector<32x64xf32>, vector<32x64xf32> -> vector<32x64xf32>
    %c1_103 = arith.constant 1 : index
    %c0_104 = arith.constant 0 : index
    %c0_105 = arith.constant 0 : index
    %263 = vector.load %arg7[%c1_103, %c0_104, %c0_105] : memref<2x1x64xf32, #tpu.memory_space<vmem>>, vector<1x1x64xf32>
    %264 = vector.shape_cast %263 : vector<1x1x64xf32> to vector<1x64xf32>
    %265 = vector.broadcast %264 : vector<1x64xf32> to vector<32x64xf32>
    %266 = arith.addf %262, %265 : vector<32x64xf32>
    %267 = arith.mulf %266, %266 : vector<32x64xf32>
    %268 = arith.mulf %266, %267 : vector<32x64xf32>
    %cst_106 = arith.constant 4.471500e-02 : f32
    %269 = vector.broadcast %cst_106 : f32 to vector<32x64xf32>
    %270 = arith.mulf %269, %268 : vector<32x64xf32>
    %271 = arith.addf %266, %270 : vector<32x64xf32>
    %cst_107 = arith.constant 0.797884583 : f32
    %272 = vector.broadcast %cst_107 : f32 to vector<32x64xf32>
    %273 = arith.mulf %272, %271 : vector<32x64xf32>
    %274 = math.tanh %273 : vector<32x64xf32>
    %cst_108 = arith.constant 1.000000e+00 : f32
    %275 = vector.broadcast %cst_108 : f32 to vector<32x64xf32>
    %276 = arith.addf %275, %274 : vector<32x64xf32>
    %cst_109 = arith.constant 5.000000e-01 : f32
    %277 = vector.broadcast %cst_109 : f32 to vector<32x64xf32>
    %278 = arith.mulf %277, %276 : vector<32x64xf32>
    %279 = arith.mulf %266, %278 : vector<32x64xf32>
    %c1_110 = arith.constant 1 : index
    %c0_111 = arith.constant 0 : index
    %c0_112 = arith.constant 0 : index
    %280 = vector.load %arg8[%c1_110, %c0_111, %c0_112] : memref<2x64x32xf32, #tpu.memory_space<vmem>>, vector<1x64x32xf32>
    %281 = vector.shape_cast %280 : vector<1x64x32xf32> to vector<64x32xf32>
    %cst_113 = arith.constant dense<0.000000e+00> : vector<32x32xf32>
    %282 = tpu.matmul %279, %281, %cst_113 {dimension_numbers = #tpu.dot_dimension_numbers<[1], [0], [0], [1], [0, 0, 1, 1], [], []>} : vector<32x64xf32>, vector<64x32xf32>, vector<32x32xf32> -> vector<32x32xf32>
    %c1_114 = arith.constant 1 : index
    %c0_115 = arith.constant 0 : index
    %c0_116 = arith.constant 0 : index
    %283 = vector.load %arg9[%c1_114, %c0_115, %c0_116] : memref<2x1x32xf32, #tpu.memory_space<vmem>>, vector<1x1x32xf32>
    %284 = vector.shape_cast %283 : vector<1x1x32xf32> to vector<1x32xf32>
    %285 = vector.broadcast %284 : vector<1x32xf32> to vector<32x32xf32>
    %286 = arith.addf %282, %285 : vector<32x32xf32>
    %287 = arith.addf %243, %286 : vector<32x32xf32>
    %cst_117 = arith.constant dense<0.000000e+00> : vector<32xf32>
    %288 = vector.multi_reduction <add>, %287, %cst_117 [1] : vector<32x32xf32> to vector<32xf32>
    %289 = vector.shape_cast %288 : vector<32xf32> to vector<32x1xf32>
    %cst_118 = arith.constant 3.200000e+01 : f32
    %290 = vector.broadcast %cst_118 : f32 to vector<32x1xf32>
    %291 = arith.divf %289, %290 : vector<32x1xf32>
    %292 = vector.broadcast %291 : vector<32x1xf32> to vector<32x32xf32>
    %293 = arith.subf %287, %292 : vector<32x32xf32>
    %294 = arith.mulf %293, %293 : vector<32x32xf32>
    %cst_119 = arith.constant dense<0.000000e+00> : vector<32xf32>
    %295 = vector.multi_reduction <add>, %294, %cst_119 [1] : vector<32x32xf32> to vector<32xf32>
    %296 = vector.shape_cast %295 : vector<32xf32> to vector<32x1xf32>
    %cst_120 = arith.constant 3.200000e+01 : f32
    %297 = vector.broadcast %cst_120 : f32 to vector<32x1xf32>
    %298 = arith.divf %296, %297 : vector<32x1xf32>
    %cst_121 = arith.constant 9.99999974E-6 : f32
    %299 = vector.broadcast %cst_121 : f32 to vector<32x1xf32>
    %300 = arith.addf %298, %299 : vector<32x1xf32>
    %301 = math.rsqrt %300 : vector<32x1xf32>
    %302 = vector.broadcast %301 : vector<32x1xf32> to vector<32x32xf32>
    %303 = arith.mulf %293, %302 : vector<32x32xf32>
    %c0_122 = arith.constant 0 : index
    %c0_123 = arith.constant 0 : index
    %304 = vector.load %arg10[%c0_122, %c0_123] : memref<1x32xf32, #tpu.memory_space<vmem>>, vector<1x32xf32>
    %305 = vector.broadcast %304 : vector<1x32xf32> to vector<32x32xf32>
    %306 = arith.mulf %303, %305 : vector<32x32xf32>
    %c0_124 = arith.constant 0 : index
    %c0_125 = arith.constant 0 : index
    %307 = vector.load %arg11[%c0_124, %c0_125] : memref<1x32xf32, #tpu.memory_space<vmem>>, vector<1x32xf32>
    %308 = vector.broadcast %307 : vector<1x32xf32> to vector<32x32xf32>
    %309 = arith.addf %306, %308 : vector<32x32xf32>
    %c0_126 = arith.constant 0 : index
    %c0_127 = arith.constant 0 : index
    %310 = vector.load %arg12[%c0_126, %c0_127] : memref<32x32xf32, #tpu.memory_space<vmem>>, vector<32x32xf32>
    tpu.vector_store %arg12[%c0_126, %c0_127], %309 {strides = array<i32>} : memref<32x32xf32, #tpu.memory_space<vmem>>, vector<32x32xf32>,
    return
  }
}

</mosaic_0001>

<llo_original>
// kernel: encode.1
$region0: #{encode.1}
  #allocation0 [shape = 'u32[]', space=smem, size = 0x4, offset = 0x4, fixed_abs, tag = 'smem constant byte address 0x4 - core index']
  #allocation1 [shape = 'u32[72,128]{1,0:T(1,128)}', space=vmem, size = 0x9000, scoped, tag = 'internal scratch']
  %s0 = inlined_call_operand.vmem [shape: f32[32,32], index: 0, kind: input, shape index: {}]
  %s1 = inlined_call_operand.vmem [shape: f32[32,32], index: 1, kind: input, shape index: {}]
  %s2 = inlined_call_operand.vmem [shape: f32[2,32,96], index: 2, kind: input, shape index: {}]
  %s3 = inlined_call_operand.vmem [shape: f32[2,1,96], index: 3, kind: input, shape index: {}]
  %s4 = inlined_call_operand.vmem [shape: f32[2,32,32], index: 4, kind: input, shape index: {}]
  %s5 = inlined_call_operand.vmem [shape: f32[2,1,32], index: 5, kind: input, shape index: {}]
  %s6 = inlined_call_operand.vmem [shape: f32[2,32,64], index: 6, kind: input, shape index: {}]
  %s7 = inlined_call_operand.vmem [shape: f32[2,1,64], index: 7, kind: input, shape index: {}]
  %s8 = inlined_call_operand.vmem [shape: f32[2,64,32], index: 8, kind: input, shape index: {}]
  %s9 = inlined_call_operand.vmem [shape: f32[2,1,32], index: 9, kind: input, shape index: {}]
  %s10 = inlined_call_operand.vmem [shape: f32[1,32], index: 10, kind: input, shape index: {}]
  %s11 = inlined_call_operand.vmem [shape: f32[1,32], index: 11, kind: input, shape index: {}]
  %s12 = inlined_call_operand.hbm [shape: f32[32,32], index: 12, kind: output, shape index: {}]
  %s13 = sld [smem:[#allocation0]]
  $region58: #{encode.1} parent=0
    _
  %s15 = ssub.s32 1, %s13
  %s16 = scalar_select 0, %s15, %s13
  $region1: #{encode.1} parent=0
    #allocation2 [shape = 'u8[16384]{0}', space=vmem, size = 0x4000, scoped, tag = 'output window, operand 0, single buffered']
    #allocation3 [shape = 's32[1]{0}', space=sflag, size = 0x4, scoped, tag = 'scoped memory for encode.1']
    %17 = vsyncpa [#allocation3], 0
    // Predicated region
    $region2: #{encode.1} parent=1 // pred_check
      _
    $region3: #{encode.1} parent=1 // pred_check_branch
      %19 = sbr.rel (0) target = $region5
    $region4: #{encode.1} parent=1 // pred_region
      _
    $region5: #{encode.1} parent=1 // pred_fallthru
      _
    // Predicated region
    $region6: #{encode.1} parent=1 // pred_check
      _
    $region7: #{encode.1} parent=1 // pred_check_branch
      %21 = sbr.rel (0) target = $region9
    $region8: #{encode.1} parent=1 // pred_region
      _
    $region9: #{encode.1} parent=1 // pred_fallthru
      _
    // Predicated region
    $region10: #{encode.1} parent=1 // pred_check
      _
    $region11: #{encode.1} parent=1 // pred_check_branch
      %23 = sbr.rel (0) target = $region13
    $region12: #{encode.1} parent=1 // pred_region
      _
    $region13: #{encode.1} parent=1 // pred_fallthru
      _
    // Predicated region
    $region14: #{encode.1} parent=1 // pred_check
      _
    $region15: #{encode.1} parent=1 // pred_check_branch
      %25 = sbr.rel (0) target = $region17
    $region16: #{encode.1} parent=1 // pred_region
      _
    $region17: #{encode.1} parent=1 // pred_fallthru
      _
    // Predicated region
    $region18: #{encode.1} parent=1 // pred_check
      _
    $region19: #{encode.1} parent=1 // pred_check_branch
      %27 = sbr.rel (0) target = $region21
    $region20: #{encode.1} parent=1 // pred_region
      _
    $region21: #{encode.1} parent=1 // pred_fallthru
      _
    // Predicated region
    $region22: #{encode.1} parent=1 // pred_check
      _
    $region23: #{encode.1} parent=1 // pred_check_branch
      %29 = sbr.rel (0) target = $region25
    $region24: #{encode.1} parent=1 // pred_region
      _
    $region25: #{encode.1} parent=1 // pred_fallthru
      _
    // Predicated region
    $region26: #{encode.1} parent=1 // pred_check
      _
    $region27: #{encode.1} parent=1 // pred_check_branch
      %31 = sbr.rel (0) target = $region29
    $region28: #{encode.1} parent=1 // pred_region
      _
    $region29: #{encode.1} parent=1 // pred_fallthru
      _
    // Predicated region
    $region30: #{encode.1} parent=1 // pred_check
      _
    $region31: #{encode.1} parent=1 // pred_check_branch
      %33 = sbr.rel (0) target = $region33
    $region32: #{encode.1} parent=1 // pred_region
      _
    $region33: #{encode.1} parent=1 // pred_fallthru
      _
    // Predicated region
    $region34: #{encode.1} parent=1 // pred_check
      _
    $region35: #{encode.1} parent=1 // pred_check_branch
      %35 = sbr.rel (0) target = $region37
    $region36: #{encode.1} parent=1 // pred_region
      _
    $region37: #{encode.1} parent=1 // pred_fallthru
      _
    // Predicated region
    $region38: #{encode.1} parent=1 // pred_check
      _
    $region39: #{encode.1} parent=1 // pred_check_branch
      %37 = sbr.rel (0) target = $region41
    $region40: #{encode.1} parent=1 // pred_region
      _
    $region41: #{encode.1} parent=1 // pred_fallthru
      _
    // Predicated region
    $region42: #{encode.1} parent=1 // pred_check
      _
    $region43: #{encode.1} parent=1 // pred_check_branch
      %39 = sbr.rel (0) target = $region45
    $region44: #{encode.1} parent=1 // pred_region
      _
    $region45: #{encode.1} parent=1 // pred_fallthru
      _
    // Predicated region
    $region46: #{encode.1} parent=1 // pred_check
      _
    $region47: #{encode.1} parent=1 // pred_check_branch
      %41 = sbr.rel (0) target = $region49
    $region48: #{encode.1} parent=1 // pred_region
      _
    $region49: #{encode.1} parent=1 // pred_fallthru
      _
    %v42 = vld [vmem:[%s0] sm:$0xff]
    %v43 = vld [vmem:[%s0 + $0x8] sm:$0xff]
    %v44 = vld [vmem:[%s0 + $0x10] sm:$0xff]
    %v45 = vld [vmem:[%s0 + $0x18] sm:$0xff]
    %v46 = vld [vmem:[%s1] sm:$0xff]
    %v47 = vld [vmem:[%s1 + $0x8] sm:$0xff]
    %v48 = vld [vmem:[%s1 + $0x10] sm:$0xff]
    %v49 = vld [vmem:[%s1 + $0x18] sm:$0xff]
    %vm50 = vcmask 261120
    %v51 = vsel %vm50, %v42, 0.0
    %52 = vadd.xlane.f32.xlu0 %v51
    %v53 = vpop.xlane.xlu0 %52
    %v54 = vsel %vm50, %v43, 0.0
    %55 = vadd.xlane.f32.xlu0 %v54
    %v56 = vpop.xlane.xlu0 %55
    %v57 = vsel %vm50, %v44, 0.0
    %58 = vadd.xlane.f32.xlu0 %v57
    %v59 = vpop.xlane.xlu0 %58
    %v60 = vsel %vm50, %v45, 0.0
    %61 = vadd.xlane.f32.xlu0 %v60
    %v62 = vpop.xlane.xlu0 %61
    %v63 = vrcp.pop 32.0
    %v64 = vmul.f32 32.0, %v63
    %v65 = vsub.f32 1.0, %v64
    %v66 = vmul.f32 %v63, %v65
    %v67 = vadd.f32 %v63, %v66
    %vm68 = vweird.f32 %v63
    %v69 = vsel %vm68, %v63, %v67
    %v70 = vmul.f32 %v53, %v69
    %v71 = vmul.f32 %v56, %v69
    %v72 = vmul.f32 %v59, %v69
    %v73 = vmul.f32 %v62, %v69
    %v74 = vsub.f32 %v42, %v70
    %v75 = vsub.f32 %v43, %v71
    %v76 = vsub.f32 %v44, %v72
    %v77 = vsub.f32 %v45, %v73
    %v78 = vmul.f32 %v74, %v74
    %v79 = vmul.f32 %v75, %v75
    %v80 = vmul.f32 %v76, %v76
    %v81 = vmul.f32 %v77, %v77
    %v82 = vsel %vm50, %v78, 0.0
    %83 = vadd.xlane.f32.xlu0 %v82
    %v84 = vpop.xlane.xlu0 %83
    %v85 = vsel %vm50, %v79, 0.0
    %86 = vadd.xlane.f32.xlu0 %v85
    %v87 = vpop.xlane.xlu0 %86
    %v88 = vsel %vm50, %v80, 0.0
    %89 = vadd.xlane.f32.xlu0 %v88
    %v90 = vpop.xlane.xlu0 %89
    %v91 = vsel %vm50, %v81, 0.0
    %92 = vadd.xlane.f32.xlu0 %v91
    %v93 = vpop.xlane.xlu0 %92
    %v94 = vmul.f32 %v84, %v69
    %v95 = vmul.f32 %v87, %v69
    %v96 = vmul.f32 %v90, %v69
    %v97 = vmul.f32 %v93, %v69
    %v98 = vadd.f32 %v94, 1e-05
    %v99 = vadd.f32 %v95, 1e-05
    %v100 = vadd.f32 %v96, 1e-05
    %v101 = vadd.f32 %v97, 1e-05
    %v102 = vrsqrt.pop %v98
    %v103 = vmul.f32 %v102, %v98
    %v104 = vmul.f32 %v103, %v102
    %v105 = vmul.f32 0.5, %v104
    %v106 = vsub.f32 1.5, %v105
    %v107 = vmul.f32 %v102, %v106
    %vm108 = vweird.f32 %v98
    %vm109 = vweird.f32 %v102
    %vm110 = vmor %vm108, %vm109
    %v111 = vsel %vm110, %v102, %v107
    %v112 = vrsqrt.pop %v99
    %v113 = vmul.f32 %v112, %v99
    %v114 = vmul.f32 %v113, %v112
    %v115 = vmul.f32 0.5, %v114
    %v116 = vsub.f32 1.5, %v115
    %v117 = vmul.f32 %v112, %v116
    %vm118 = vweird.f32 %v99
    %vm119 = vweird.f32 %v112
    %vm120 = vmor %vm118, %vm119
    %v121 = vsel %vm120, %v112, %v117
    %v122 = vrsqrt.pop %v100
    %v123 = vmul.f32 %v122, %v100
    %v124 = vmul.f32 %v123, %v122
    %v125 = vmul.f32 0.5, %v124
    %v126 = vsub.f32 1.5, %v125
    %v127 = vmul.f32 %v122, %v126
    %vm128 = vweird.f32 %v100
    %vm129 = vweird.f32 %v122
    %vm130 = vmor %vm128, %vm129
    %v131 = vsel %vm130, %v122, %v127
    %v132 = vrsqrt.pop %v101
    %v133 = vmul.f32 %v132, %v101
    %v134 = vmul.f32 %v133, %v132
    %v135 = vmul.f32 0.5, %v134
    %v136 = vsub.f32 1.5, %v135
    %v137 = vmul.f32 %v132, %v136
    %vm138 = vweird.f32 %v101
    %vm139 = vweird.f32 %v132
    %vm140 = vmor %vm138, %vm139
    %v141 = vsel %vm140, %v132, %v137
    %v142 = vmul.f32 %v74, %v111
    %v143 = vmul.f32 %v75, %v121
    %v144 = vmul.f32 %v76, %v131
    %v145 = vmul.f32 %v77, %v141
    %v146 = vld [vmem:[%s2] sm:$0xff]
    %v147 = vld [vmem:[%s2 + $0x8] sm:$0xff]
    %v148 = vld [vmem:[%s2 + $0x10] sm:$0xff]
    %v149 = vld [vmem:[%s2 + $0x18] sm:$0xff]
    %v150 = vld [vmem:[%s3] sm:$0x1]
    %v152 = vperm.slane %v150, 0
    %v155 = vsel %vm50, %v142, 0
    %v158 = vsel %vm50, %v143, 0
    %v161 = vsel %vm50, %v144, 0
    %v164 = vsel %vm50, %v145, 0
    %166 = vmatpush.msra.mxu0 0.0
    %167 = vmatpush.msra.mxu0 0.0
    %168 = vmatpush.msra.mxu0 0.0
    %169 = vmatpush.msra.mxu0 0.0
    %170 = vmatpush.msra.mxu0 0.0
    %171 = vmatpush.msra.mxu0 0.0
    %172 = vmatpush.msra.mxu0 0.0
    %173 = vmatpush.msra.mxu0 0.0
    %174 = vmatpush.msra.mxu0 0.0
    %175 = vmatpush.msra.mxu0 0.0
    %176 = vmatpush.msra.mxu0 0.0
    %177 = vmatpush.msra.mxu0 0.0
    %178 = vmatpush.msra.mxu0 %v149
    %179 = vmatpush.msra.mxu0 %v148
    %180 = vmatpush.msra.mxu0 %v147
    %181 = vmatpush.msra.mxu0 %v146
    %182 = vmatmul.f32.gmra.mxu0 %v155
    %v183 = vpop.f32.mrf.mxu0
    %v184 = vadd.f32 %v152, %v183
    %185 = vmatmul.f32.gmra.mxu0 %v158
    %v186 = vpop.f32.mrf.mxu0
    %v187 = vadd.f32 %v152, %v186
    %188 = vmatmul.f32.gmra.mxu0 %v161
    %v189 = vpop.f32.mrf.mxu0
    %v190 = vadd.f32 %v152, %v189
    %191 = vmatmul.f32.gmra.mxu0 %v164
    %v192 = vpop.f32.mrf.mxu0
    %v193 = vadd.f32 %v152, %v192
    %194 = vdwg.mxu0
    %199 = vrot.lane.b32.xlu0 %v184, 96
    %v200 = vpop.permute.xlu0 %199
    %201 = vrot.lane.b32.xlu0 %v187, 96
    %v202 = vpop.permute.xlu0 %201
    %203 = vrot.lane.b32.xlu0 %v190, 96
    %v204 = vpop.permute.xlu0 %203
    %205 = vrot.lane.b32.xlu0 %v193, 96
    %v206 = vpop.permute.xlu0 %205
    %vm207 = vcmask 64512
    %v208 = vsel %vm207, %v184, 0
    %v210 = vsel %vm207, %v187, 0
    %v212 = vsel %vm207, %v190, 0
    %v214 = vsel %vm207, %v193, 0
    %v216 = vsel %vm207, %v200, 0
    %v218 = vsel %vm207, %v202, 0
    %v220 = vsel %vm207, %v204, 0
    %v222 = vsel %vm207, %v206, 0
    %224 = vmatpush.xpose.msra.mxu0 0.0
    %225 = vmatpush.xpose.msra.mxu0 0.0
    %226 = vmatpush.xpose.msra.mxu0 0.0
    %227 = vmatpush.xpose.msra.mxu0 0.0
    %228 = vmatpush.xpose.msra.mxu0 0.0
    %229 = vmatpush.xpose.msra.mxu0 0.0
    %230 = vmatpush.xpose.msra.mxu0 0.0
    %231 = vmatpush.xpose.msra.mxu0 0.0
    %232 = vmatpush.xpose.msra.mxu0 0.0
    %233 = vmatpush.xpose.msra.mxu0 0.0
    %234 = vmatpush.xpose.msra.mxu0 0.0
    %235 = vmatpush.xpose.msra.mxu0 0.0
    %236 = vmatpush.xpose.msra.mxu0 %v222
    %237 = vmatpush.xpose.msra.mxu0 %v220
    %238 = vmatpush.xpose.msra.mxu0 %v218
    %239 = vmatpush.xpose.msra.mxu0 %v216
    %240 = vmatmul.f32.gmra.mxu0 %v208
    %v241 = vpop.f32.mrf.mxu0
    %v242 = vadd.f32 %v46, %v241
    %243 = vmatmul.f32.gmra.mxu0 %v210
    %v244 = vpop.f32.mrf.mxu0
    %v245 = vadd.f32 %v47, %v244
    %246 = vmatmul.f32.gmra.mxu0 %v212
    %v247 = vpop.f32.mrf.mxu0
    %v248 = vadd.f32 %v48, %v247
    %249 = vmatmul.f32.gmra.mxu0 %v214
    %v250 = vpop.f32.mrf.mxu0
    %v251 = vadd.f32 %v49, %v250
    %252 = vdwg.mxu0
    %v253 = vsel %vm50, %v242, -inf
    %254 = vmax.xlane.f32.xlu0 %v253
    %v255 = vpop.xlane.xlu0 %254
    %v256 = vsel %vm50, %v245, -inf
    %257 = vmax.xlane.f32.xlu0 %v256
    %v258 = vpop.xlane.xlu0 %257
    %v259 = vsel %vm50, %v248, -inf
    %260 = vmax.xlane.f32.xlu0 %v259
    %v261 = vpop.xlane.xlu0 %260
    %v262 = vsel %vm50, %v251, -inf
    %263 = vmax.xlane.f32.xlu0 %v262
    %v264 = vpop.xlane.xlu0 %263
    %v265 = vsub.f32 %v242, %v255
    %v266 = vsub.f32 %v245, %v258
    %v267 = vsub.f32 %v248, %v261
    %v268 = vsub.f32 %v251, %v264
    %v269 = vmul.f32 %v265, 1.442695
    %v270 = vpow.pop %v269
    %v271 = vmul.f32 %v266, 1.442695
    %v272 = vpow.pop %v271
    %v273 = vmul.f32 %v267, 1.442695
    %v274 = vpow.pop %v273
    %v275 = vmul.f32 %v268, 1.442695
    %v276 = vpow.pop %v275
    %v277 = vsel %vm50, %v270, 0.0
    %278 = vadd.xlane.f32.xlu0 %v277
    %v279 = vpop.xlane.xlu0 %278
    %v280 = vsel %vm50, %v272, 0.0
    %281 = vadd.xlane.f32.xlu0 %v280
    %v282 = vpop.xlane.xlu0 %281
    %v283 = vsel %vm50, %v274, 0.0
    %284 = vadd.xlane.f32.xlu0 %v283
    %v285 = vpop.xlane.xlu0 %284
    %v286 = vsel %vm50, %v276, 0.0
    %287 = vadd.xlane.f32.xlu0 %v286
    %v288 = vpop.xlane.xlu0 %287
    %v289 = vrcp.pop %v279
    %v290 = vrcp.pop %v282
    %v291 = vrcp.pop %v285
    %v292 = vrcp.pop %v288
    %v293 = vmul.f32 %v270, %v289
    %v294 = vmul.f32 %v272, %v290
    %v295 = vmul.f32 %v274, %v291
    %v296 = vmul.f32 %v276, %v292
    %297 = vrot.lane.b32.xlu0 %v184, 64
    %v298 = vpop.permute.xlu0 %297
    %299 = vrot.lane.b32.xlu0 %v187, 64
    %v300 = vpop.permute.xlu0 %299
    %301 = vrot.lane.b32.xlu0 %v190, 64
    %v302 = vpop.permute.xlu0 %301
    %303 = vrot.lane.b32.xlu0 %v193, 64
    %v304 = vpop.permute.xlu0 %303
    %v310 = vsel %vm50, %v293, 0
    %v313 = vsel %vm50, %v294, 0
    %v316 = vsel %vm50, %v295, 0
    %v319 = vsel %vm50, %v296, 0
    %321 = vmatpush.msra.mxu0 0.0
    %322 = vmatpush.msra.mxu0 0.0
    %323 = vmatpush.msra.mxu0 0.0
    %324 = vmatpush.msra.mxu0 0.0
    %325 = vmatpush.msra.mxu0 0.0
    %326 = vmatpush.msra.mxu0 0.0
    %327 = vmatpush.msra.mxu0 0.0
    %328 = vmatpush.msra.mxu0 0.0
    %329 = vmatpush.msra.mxu0 0.0
    %330 = vmatpush.msra.mxu0 0.0
    %331 = vmatpush.msra.mxu0 0.0
    %332 = vmatpush.msra.mxu0 0.0
    %333 = vmatpush.msra.mxu0 %v304
    %334 = vmatpush.msra.mxu0 %v302
    %335 = vmatpush.msra.mxu0 %v300
    %336 = vmatpush.msra.mxu0 %v298
    %337 = vmatmul.f32.gmra.mxu0 %v310
    %v338 = vpop.f32.mrf.mxu0
    %v339 = vadd.f32 0.0, %v338
    %340 = vmatmul.f32.gmra.mxu0 %v313
    %v341 = vpop.f32.mrf.mxu0
    %v342 = vadd.f32 0.0, %v341
    %343 = vmatmul.f32.gmra.mxu0 %v316
    %v344 = vpop.f32.mrf.mxu0
    %v345 = vadd.f32 0.0, %v344
    %346 = vmatmul.f32.gmra.mxu0 %v319
    %v347 = vpop.f32.mrf.mxu0
    %v348 = vadd.f32 0.0, %v347
    %349 = vdwg.mxu0
    %350 = vrot.lane.b32.xlu0 %v184, 120
    %v351 = vpop.permute.xlu0 %350
    %352 = vrot.lane.b32.xlu0 %v187, 120
    %v353 = vpop.permute.xlu0 %352
    %354 = vrot.lane.b32.xlu0 %v190, 120
    %v355 = vpop.permute.xlu0 %354
    %356 = vrot.lane.b32.xlu0 %v193, 120
    %v357 = vpop.permute.xlu0 %356
    %358 = vrot.lane.b32.xlu0 %v184, 88
    %v359 = vpop.permute.xlu0 %358
    %360 = vrot.lane.b32.xlu0 %v187, 88
    %v361 = vpop.permute.xlu0 %360
    %362 = vrot.lane.b32.xlu0 %v190, 88
    %v363 = vpop.permute.xlu0 %362
    %364 = vrot.lane.b32.xlu0 %v193, 88
    %v365 = vpop.permute.xlu0 %364
    %v366 = vsel %vm207, %v351, 0
    %v368 = vsel %vm207, %v353, 0
    %v370 = vsel %vm207, %v355, 0
    %v372 = vsel %vm207, %v357, 0
    %v374 = vsel %vm207, %v359, 0
    %v376 = vsel %vm207, %v361, 0
    %v378 = vsel %vm207, %v363, 0
    %v380 = vsel %vm207, %v365, 0
    %382 = vmatpush.xpose.msra.mxu0 0.0
    %383 = vmatpush.xpose.msra.mxu0 0.0
    %384 = vmatpush.xpose.msra.mxu0 0.0
    %385 = vmatpush.xpose.msra.mxu0 0.0
    %386 = vmatpush.xpose.msra.mxu0 0.0
    %387 = vmatpush.xpose.msra.mxu0 0.0
    %388 = vmatpush.xpose.msra.mxu0 0.0
    %389 = vmatpush.xpose.msra.mxu0 0.0
    %390 = vmatpush.xpose.msra.mxu0 0.0
    %391 = vmatpush.xpose.msra.mxu0 0.0
    %392 = vmatpush.xpose.msra.mxu0 0.0
    %393 = vmatpush.xpose.msra.mxu0 0.0
    %394 = vmatpush.xpose.msra.mxu0 %v380
    %395 = vmatpush.xpose.msra.mxu0 %v378
    %396 = vmatpush.xpose.msra.mxu0 %v376
    %397 = vmatpush.xpose.msra.mxu0 %v374
    %398 = vmatmul.f32.gmra.mxu0 %v366
    %v399 = vpop.f32.mrf.mxu0
    %v400 = vadd.f32 %v46, %v399
    %401 = vmatmul.f32.gmra.mxu0 %v368
    %v402 = vpop.f32.mrf.mxu0
    %v403 = vadd.f32 %v47, %v402
    %404 = vmatmul.f32.gmra.mxu0 %v370
    %v405 = vpop.f32.mrf.mxu0
    %v406 = vadd.f32 %v48, %v405
    %407 = vmatmul.f32.gmra.mxu0 %v372
    %v408 = vpop.f32.mrf.mxu0
    %v409 = vadd.f32 %v49, %v408
    %410 = vdwg.mxu0
    %v411 = vsel %vm50, %v400, -inf
    %412 = vmax.xlane.f32.xlu0 %v411
    %v413 = vpop.xlane.xlu0 %412
    %v414 = vsel %vm50, %v403, -inf
    %415 = vmax.xlane.f32.xlu0 %v414
    %v416 = vpop.xlane.xlu0 %415
    %v417 = vsel %vm50, %v406, -inf
    %418 = vmax.xlane.f32.xlu0 %v417
    %v419 = vpop.xlane.xlu0 %418
    %v420 = vsel %vm50, %v409, -inf
    %421 = vmax.xlane.f32.xlu0 %v420
    %v422 = vpop.xlane.xlu0 %421
    %v423 = vsub.f32 %v400, %v413
    %v424 = vsub.f32 %v403, %v416
    %v425 = vsub.f32 %v406, %v419
    %v426 = vsub.f32 %v409, %v422
    %v427 = vmul.f32 %v423, 1.442695
    %v428 = vpow.pop %v427
    %v429 = vmul.f32 %v424, 1.442695
    %v430 = vpow.pop %v429
    %v431 = vmul.f32 %v425, 1.442695
    %v432 = vpow.pop %v431
    %v433 = vmul.f32 %v426, 1.442695
    %v434 = vpow.pop %v433
    %v435 = vsel %vm50, %v428, 0.0
    %436 = vadd.xlane.f32.xlu0 %v435
    %v437 = vpop.xlane.xlu0 %436
    %v438 = vsel %vm50, %v430, 0.0
    %439 = vadd.xlane.f32.xlu0 %v438
    %v440 = vpop.xlane.xlu0 %439
    %v441 = vsel %vm50, %v432, 0.0
    %442 = vadd.xlane.f32.xlu0 %v441
    %v443 = vpop.xlane.xlu0 %442
    %v444 = vsel %vm50, %v434, 0.0
    %445 = vadd.xlane.f32.xlu0 %v444
    %v446 = vpop.xlane.xlu0 %445
    %v447 = vrcp.pop %v437
    %v448 = vrcp.pop %v440
    %v449 = vrcp.pop %v443
    %v450 = vrcp.pop %v446
    %v451 = vmul.f32 %v428, %v447
    %v452 = vmul.f32 %v430, %v448
    %v453 = vmul.f32 %v432, %v449
    %v454 = vmul.f32 %v434, %v450
    %455 = vrot.lane.b32.xlu0 %v184, 56
    %v456 = vpop.permute.xlu0 %455
    %457 = vrot.lane.b32.xlu0 %v187, 56
    %v458 = vpop.permute.xlu0 %457
    %459 = vrot.lane.b32.xlu0 %v190, 56
    %v460 = vpop.permute.xlu0 %459
    %461 = vrot.lane.b32.xlu0 %v193, 56
    %v462 = vpop.permute.xlu0 %461
    %v468 = vsel %vm50, %v451, 0
    %v471 = vsel %vm50, %v452, 0
    %v474 = vsel %vm50, %v453, 0
    %v477 = vsel %vm50, %v454, 0
    %479 = vmatpush.msra.mxu0 0.0
    %480 = vmatpush.msra.mxu0 0.0
    %481 = vmatpush.msra.mxu0 0.0
    %482 = vmatpush.msra.mxu0 0.0
    %483 = vmatpush.msra.mxu0 0.0
    %484 = vmatpush.msra.mxu0 0.0
    %485 = vmatpush.msra.mxu0 0.0
    %486 = vmatpush.msra.mxu0 0.0
    %487 = vmatpush.msra.mxu0 0.0
    %488 = vmatpush.msra.mxu0 0.0
    %489 = vmatpush.msra.mxu0 0.0
    %490 = vmatpush.msra.mxu0 0.0
    %491 = vmatpush.msra.mxu0 %v462
    %492 = vmatpush.msra.mxu0 %v460
    %493 = vmatpush.msra.mxu0 %v458
    %494 = vmatpush.msra.mxu0 %v456
    %495 = vmatmul.f32.gmra.mxu0 %v468
    %v496 = vpop.f32.mrf.mxu0
    %v497 = vadd.f32 0.0, %v496
    %498 = vmatmul.f32.gmra.mxu0 %v471
    %v499 = vpop.f32.mrf.mxu0
    %v500 = vadd.f32 0.0, %v499
    %501 = vmatmul.f32.gmra.mxu0 %v474
    %v502 = vpop.f32.mrf.mxu0
    %v503 = vadd.f32 0.0, %v502
    %504 = vmatmul.f32.gmra.mxu0 %v477
    %v505 = vpop.f32.mrf.mxu0
    %v506 = vadd.f32 0.0, %v505
    %507 = vdwg.mxu0
    %508 = vrot.lane.b32.xlu0 %v184, 112
    %v509 = vpop.permute.xlu0 %508
    %510 = vrot.lane.b32.xlu0 %v187, 112
    %v511 = vpop.permute.xlu0 %510
    %512 = vrot.lane.b32.xlu0 %v190, 112
    %v513 = vpop.permute.xlu0 %512
    %514 = vrot.lane.b32.xlu0 %v193, 112
    %v515 = vpop.permute.xlu0 %514
    %516 = vrot.lane.b32.xlu0 %v184, 80
    %v517 = vpop.permute.xlu0 %516
    %518 = vrot.lane.b32.xlu0 %v187, 80
    %v519 = vpop.permute.xlu0 %518
    %520 = vrot.lane.b32.xlu0 %v190, 80
    %v521 = vpop.permute.xlu0 %520
    %522 = vrot.lane.b32.xlu0 %v193, 80
    %v523 = vpop.permute.xlu0 %522
    %v524 = vsel %vm207, %v509, 0
    %v526 = vsel %vm207, %v511, 0
    %v528 = vsel %vm207, %v513, 0
    %v530 = vsel %vm207, %v515, 0
    %v532 = vsel %vm207, %v517, 0
    %v534 = vsel %vm207, %v519, 0
    %v536 = vsel %vm207, %v521, 0
    %v538 = vsel %vm207, %v523, 0
    %540 = vmatpush.xpose.msra.mxu0 0.0
    %541 = vmatpush.xpose.msra.mxu0 0.0
    %542 = vmatpush.xpose.msra.mxu0 0.0
    %543 = vmatpush.xpose.msra.mxu0 0.0
    %544 = vmatpush.xpose.msra.mxu0 0.0
    %545 = vmatpush.xpose.msra.mxu0 0.0
    %546 = vmatpush.xpose.msra.mxu0 0.0
    %547 = vmatpush.xpose.msra.mxu0 0.0
    %548 = vmatpush.xpose.msra.mxu0 0.0
    %549 = vmatpush.xpose.msra.mxu0 0.0
    %550 = vmatpush.xpose.msra.mxu0 0.0
    %551 = vmatpush.xpose.msra.mxu0 0.0
    %552 = vmatpush.xpose.msra.mxu0 %v538
    %553 = vmatpush.xpose.msra.mxu0 %v536
    %554 = vmatpush.xpose.msra.mxu0 %v534
    %555 = vmatpush.xpose.msra.mxu0 %v532
    %556 = vmatmul.f32.gmra.mxu0 %v524
    %v557 = vpop.f32.mrf.mxu0
    %v558 = vadd.f32 %v46, %v557
    %559 = vmatmul.f32.gmra.mxu0 %v526
    %v560 = vpop.f32.mrf.mxu0
    %v561 = vadd.f32 %v47, %v560
    %562 = vmatmul.f32.gmra.mxu0 %v528
    %v563 = vpop.f32.mrf.mxu0
    %v564 = vadd.f32 %v48, %v563
    %565 = vmatmul.f32.gmra.mxu0 %v530
    %v566 = vpop.f32.mrf.mxu0
    %v567 = vadd.f32 %v49, %v566
    %568 = vdwg.mxu0
    %v569 = vsel %vm50, %v558, -inf
    %570 = vmax.xlane.f32.xlu0 %v569
    %v571 = vpop.xlane.xlu0 %570
    %v572 = vsel %vm50, %v561, -inf
    %573 = vmax.xlane.f32.xlu0 %v572
    %v574 = vpop.xlane.xlu0 %573
    %v575 = vsel %vm50, %v564, -inf
    %576 = vmax.xlane.f32.xlu0 %v575
    %v577 = vpop.xlane.xlu0 %576
    %v578 = vsel %vm50, %v567, -inf
    %579 = vmax.xlane.f32.xlu0 %v578
    %v580 = vpop.xlane.xlu0 %579
    %v581 = vsub.f32 %v558, %v571
    %v582 = vsub.f32 %v561, %v574
    %v583 = vsub.f32 %v564, %v577
    %v584 = vsub.f32 %v567, %v580
    %v585 = vmul.f32 %v581, 1.442695
    %v586 = vpow.pop %v585
    %v587 = vmul.f32 %v582, 1.442695
    %v588 = vpow.pop %v587
    %v589 = vmul.f32 %v583, 1.442695
    %v590 = vpow.pop %v589
    %v591 = vmul.f32 %v584, 1.442695
    %v592 = vpow.pop %v591
    %v593 = vsel %vm50, %v586, 0.0
    %594 = vadd.xlane.f32.xlu0 %v593
    %v595 = vpop.xlane.xlu0 %594
    %v596 = vsel %vm50, %v588, 0.0
    %597 = vadd.xlane.f32.xlu0 %v596
    %v598 = vpop.xlane.xlu0 %597
    %v599 = vsel %vm50, %v590, 0.0
    %600 = vadd.xlane.f32.xlu0 %v599
    %v601 = vpop.xlane.xlu0 %600
    %v602 = vsel %vm50, %v592, 0.0
    %603 = vadd.xlane.f32.xlu0 %v602
    %v604 = vpop.xlane.xlu0 %603
    %v605 = vrcp.pop %v595
    %v606 = vrcp.pop %v598
    %v607 = vrcp.pop %v601
    %v608 = vrcp.pop %v604
    %v609 = vmul.f32 %v586, %v605
    %v610 = vmul.f32 %v588, %v606
    %v611 = vmul.f32 %v590, %v607
    %v612 = vmul.f32 %v592, %v608
    %613 = vrot.lane.b32.xlu0 %v184, 48
    %v614 = vpop.permute.xlu0 %613
    %615 = vrot.lane.b32.xlu0 %v187, 48
    %v616 = vpop.permute.xlu0 %615
    %617 = vrot.lane.b32.xlu0 %v190, 48
    %v618 = vpop.permute.xlu0 %617
    %619 = vrot.lane.b32.xlu0 %v193, 48
    %v620 = vpop.permute.xlu0 %619
    %v626 = vsel %vm50, %v609, 0
    %v629 = vsel %vm50, %v610, 0
    %v632 = vsel %vm50, %v611, 0
    %v635 = vsel %vm50, %v612, 0
    %637 = vmatpush.msra.mxu0 0.0
    %638 = vmatpush.msra.mxu0 0.0
    %639 = vmatpush.msra.mxu0 0.0
    %640 = vmatpush.msra.mxu0 0.0
    %641 = vmatpush.msra.mxu0 0.0
    %642 = vmatpush.msra.mxu0 0.0
    %643 = vmatpush.msra.mxu0 0.0
    %644 = vmatpush.msra.mxu0 0.0
    %645 = vmatpush.msra.mxu0 0.0
    %646 = vmatpush.msra.mxu0 0.0
    %647 = vmatpush.msra.mxu0 0.0
    %648 = vmatpush.msra.mxu0 0.0
    %649 = vmatpush.msra.mxu0 %v620
    %650 = vmatpush.msra.mxu0 %v618
    %651 = vmatpush.msra.mxu0 %v616
    %652 = vmatpush.msra.mxu0 %v614
    %653 = vmatmul.f32.gmra.mxu0 %v626
    %v654 = vpop.f32.mrf.mxu0
    %v655 = vadd.f32 0.0, %v654
    %656 = vmatmul.f32.gmra.mxu0 %v629
    %v657 = vpop.f32.mrf.mxu0
    %v658 = vadd.f32 0.0, %v657
    %659 = vmatmul.f32.gmra.mxu0 %v632
    %v660 = vpop.f32.mrf.mxu0
    %v661 = vadd.f32 0.0, %v660
    %662 = vmatmul.f32.gmra.mxu0 %v635
    %v663 = vpop.f32.mrf.mxu0
    %v664 = vadd.f32 0.0, %v663
    %665 = vdwg.mxu0
    %666 = vrot.lane.b32.xlu0 %v184, 104
    %v667 = vpop.permute.xlu0 %666
    %668 = vrot.lane.b32.xlu0 %v187, 104
    %v669 = vpop.permute.xlu0 %668
    %670 = vrot.lane.b32.xlu0 %v190, 104
    %v671 = vpop.permute.xlu0 %670
    %672 = vrot.lane.b32.xlu0 %v193, 104
    %v673 = vpop.permute.xlu0 %672
    %674 = vrot.lane.b32.xlu0 %v184, 72
    %v675 = vpop.permute.xlu0 %674
    %676 = vrot.lane.b32.xlu0 %v187, 72
    %v677 = vpop.permute.xlu0 %676
    %678 = vrot.lane.b32.xlu0 %v190, 72
    %v679 = vpop.permute.xlu0 %678
    %680 = vrot.lane.b32.xlu0 %v193, 72
    %v681 = vpop.permute.xlu0 %680
    %v682 = vsel %vm207, %v667, 0
    %v684 = vsel %vm207, %v669, 0
    %v686 = vsel %vm207, %v671, 0
    %v688 = vsel %vm207, %v673, 0
    %v690 = vsel %vm207, %v675, 0
    %v692 = vsel %vm207, %v677, 0
    %v694 = vsel %vm207, %v679, 0
    %v696 = vsel %vm207, %v681, 0
    %698 = vmatpush.xpose.msra.mxu0 0.0
    %699 = vmatpush.xpose.msra.mxu0 0.0
    %700 = vmatpush.xpose.msra.mxu0 0.0
    %701 = vmatpush.xpose.msra.mxu0 0.0
    %702 = vmatpush.xpose.msra.mxu0 0.0
    %703 = vmatpush.xpose.msra.mxu0 0.0
    %704 = vmatpush.xpose.msra.mxu0 0.0
    %705 = vmatpush.xpose.msra.mxu0 0.0
    %706 = vmatpush.xpose.msra.mxu0 0.0
    %707 = vmatpush.xpose.msra.mxu0 0.0
    %708 = vmatpush.xpose.msra.mxu0 0.0
    %709 = vmatpush.xpose.msra.mxu0 0.0
    %710 = vmatpush.xpose.msra.mxu0 %v696
    %711 = vmatpush.xpose.msra.mxu0 %v694
    %712 = vmatpush.xpose.msra.mxu0 %v692
    %713 = vmatpush.xpose.msra.mxu0 %v690
    %714 = vmatmul.f32.gmra.mxu0 %v682
    %v715 = vpop.f32.mrf.mxu0
    %v716 = vadd.f32 %v46, %v715
    %717 = vmatmul.f32.gmra.mxu0 %v684
    %v718 = vpop.f32.mrf.mxu0
    %v719 = vadd.f32 %v47, %v718
    %720 = vmatmul.f32.gmra.mxu0 %v686
    %v721 = vpop.f32.mrf.mxu0
    %v722 = vadd.f32 %v48, %v721
    %723 = vmatmul.f32.gmra.mxu0 %v688
    %v724 = vpop.f32.mrf.mxu0
    %v725 = vadd.f32 %v49, %v724
    %726 = vdwg.mxu0
    %v727 = vsel %vm50, %v716, -inf
    %728 = vmax.xlane.f32.xlu0 %v727
    %v729 = vpop.xlane.xlu0 %728
    %v730 = vsel %vm50, %v719, -inf
    %731 = vmax.xlane.f32.xlu0 %v730
    %v732 = vpop.xlane.xlu0 %731
    %v733 = vsel %vm50, %v722, -inf
    %734 = vmax.xlane.f32.xlu0 %v733
    %v735 = vpop.xlane.xlu0 %734
    %v736 = vsel %vm50, %v725, -inf
    %737 = vmax.xlane.f32.xlu0 %v736
    %v738 = vpop.xlane.xlu0 %737
    %v739 = vsub.f32 %v716, %v729
    %v740 = vsub.f32 %v719, %v732
    %v741 = vsub.f32 %v722, %v735
    %v742 = vsub.f32 %v725, %v738
    %v743 = vmul.f32 %v739, 1.442695
    %v744 = vpow.pop %v743
    %v745 = vmul.f32 %v740, 1.442695
    %v746 = vpow.pop %v745
    %v747 = vmul.f32 %v741, 1.442695
    %v748 = vpow.pop %v747
    %v749 = vmul.f32 %v742, 1.442695
    %v750 = vpow.pop %v749
    %v751 = vsel %vm50, %v744, 0.0
    %752 = vadd.xlane.f32.xlu0 %v751
    %v753 = vpop.xlane.xlu0 %752
    %v754 = vsel %vm50, %v746, 0.0
    %755 = vadd.xlane.f32.xlu0 %v754
    %v756 = vpop.xlane.xlu0 %755
    %v757 = vsel %vm50, %v748, 0.0
    %758 = vadd.xlane.f32.xlu0 %v757
    %v759 = vpop.xlane.xlu0 %758
    %v760 = vsel %vm50, %v750, 0.0
    %761 = vadd.xlane.f32.xlu0 %v760
    %v762 = vpop.xlane.xlu0 %761
    %v763 = vrcp.pop %v753
    %v764 = vrcp.pop %v756
    %v765 = vrcp.pop %v759
    %v766 = vrcp.pop %v762
    %v767 = vmul.f32 %v744, %v763
    %v768 = vmul.f32 %v746, %v764
    %v769 = vmul.f32 %v748, %v765
    %v770 = vmul.f32 %v750, %v766
    %771 = vrot.lane.b32.xlu0 %v184, 40
    %v772 = vpop.permute.xlu0 %771
    %773 = vrot.lane.b32.xlu0 %v187, 40
    %v774 = vpop.permute.xlu0 %773
    %775 = vrot.lane.b32.xlu0 %v190, 40
    %v776 = vpop.permute.xlu0 %775
    %777 = vrot.lane.b32.xlu0 %v193, 40
    %v778 = vpop.permute.xlu0 %777
    %v784 = vsel %vm50, %v767, 0
    %v787 = vsel %vm50, %v768, 0
    %v790 = vsel %vm50, %v769, 0
    %v793 = vsel %vm50, %v770, 0
    %795 = vmatpush.msra.mxu0 0.0
    %796 = vmatpush.msra.mxu0 0.0
    %797 = vmatpush.msra.mxu0 0.0
    %798 = vmatpush.msra.mxu0 0.0
    %799 = vmatpush.msra.mxu0 0.0
    %800 = vmatpush.msra.mxu0 0.0
    %801 = vmatpush.msra.mxu0 0.0
    %802 = vmatpush.msra.mxu0 0.0
    %803 = vmatpush.msra.mxu0 0.0
    %804 = vmatpush.msra.mxu0 0.0
    %805 = vmatpush.msra.mxu0 0.0
    %806 = vmatpush.msra.mxu0 0.0
    %807 = vmatpush.msra.mxu0 %v778
    %808 = vmatpush.msra.mxu0 %v776
    %809 = vmatpush.msra.mxu0 %v774
    %810 = vmatpush.msra.mxu0 %v772
    %811 = vmatmul.f32.gmra.mxu0 %v784
    %v812 = vpop.f32.mrf.mxu0
    %v813 = vadd.f32 0.0, %v812
    %814 = vmatmul.f32.gmra.mxu0 %v787
    %v815 = vpop.f32.mrf.mxu0
    %v816 = vadd.f32 0.0, %v815
    %817 = vmatmul.f32.gmra.mxu0 %v790
    %v818 = vpop.f32.mrf.mxu0
    %v819 = vadd.f32 0.0, %v818
    %820 = vmatmul.f32.gmra.mxu0 %v793
    %v821 = vpop.f32.mrf.mxu0
    %v822 = vadd.f32 0.0, %v821
    %823 = vdwg.mxu0
    %828 = vrot.lane.b32.xlu0 %v497, 8
    %v829 = vpop.permute.xlu0 %828
    %830 = vrot.lane.b32.xlu0 %v500, 8
    %v831 = vpop.permute.xlu0 %830
    %832 = vrot.lane.b32.xlu0 %v503, 8
    %v833 = vpop.permute.xlu0 %832
    %834 = vrot.lane.b32.xlu0 %v506, 8
    %v835 = vpop.permute.xlu0 %834
    %844 = vrot.lane.b32.xlu0 %v655, 16
    %v845 = vpop.permute.xlu0 %844
    %846 = vrot.lane.b32.xlu0 %v658, 16
    %v847 = vpop.permute.xlu0 %846
    %848 = vrot.lane.b32.xlu0 %v661, 16
    %v849 = vpop.permute.xlu0 %848
    %850 = vrot.lane.b32.xlu0 %v664, 16
    %v851 = vpop.permute.xlu0 %850
    %860 = vrot.lane.b32.xlu0 %v813, 24
    %v861 = vpop.permute.xlu0 %860
    %862 = vrot.lane.b32.xlu0 %v816, 24
    %v863 = vpop.permute.xlu0 %862
    %864 = vrot.lane.b32.xlu0 %v819, 24
    %v865 = vpop.permute.xlu0 %864
    %866 = vrot.lane.b32.xlu0 %v822, 24
    %v867 = vpop.permute.xlu0 %866
    %v872 = vsel %vm207, %v339, %v829
    %v873 = vsel %vm207, %v342, %v831
    %v874 = vsel %vm207, %v345, %v833
    %v875 = vsel %vm207, %v348, %v835
    %vm876 = vcmask 130048
    %v877 = vsel %vm876, %v872, %v845
    %v878 = vsel %vm876, %v873, %v847
    %v879 = vsel %vm876, %v874, %v849
    %v880 = vsel %vm876, %v875, %v851
    %vm881 = vcmask 195584
    %v882 = vsel %vm881, %v877, %v861
    %v883 = vsel %vm881, %v878, %v863
    %v884 = vsel %vm881, %v879, %v865
    %v885 = vsel %vm881, %v880, %v867
    %v886 = vld [vmem:[%s4] sm:$0xff]
    %v887 = vld [vmem:[%s4 + $0x8] sm:$0xff]
    %v888 = vld [vmem:[%s4 + $0x10] sm:$0xff]
    %v889 = vld [vmem:[%s4 + $0x18] sm:$0xff]
    %v890 = vld [vmem:[%s5] sm:$0x1]
    %v892 = vperm.slane %v890, 0
    %v895 = vsel %vm50, %v882, 0
    %v898 = vsel %vm50, %v883, 0
    %v901 = vsel %vm50, %v884, 0
    %v904 = vsel %vm50, %v885, 0
    %906 = vmatpush.msra.mxu0 0.0
    %907 = vmatpush.msra.mxu0 0.0
    %908 = vmatpush.msra.mxu0 0.0
    %909 = vmatpush.msra.mxu0 0.0
    %910 = vmatpush.msra.mxu0 0.0
    %911 = vmatpush.msra.mxu0 0.0
    %912 = vmatpush.msra.mxu0 0.0
    %913 = vmatpush.msra.mxu0 0.0
    %914 = vmatpush.msra.mxu0 0.0
    %915 = vmatpush.msra.mxu0 0.0
    %916 = vmatpush.msra.mxu0 0.0
    %917 = vmatpush.msra.mxu0 0.0
    %918 = vmatpush.msra.mxu0 %v889
    %919 = vmatpush.msra.mxu0 %v888
    %920 = vmatpush.msra.mxu0 %v887
    %921 = vmatpush.msra.mxu0 %v886
    %922 = vmatmul.f32.gmra.mxu0 %v895
    %v923 = vpop.f32.mrf.mxu0
    %v924 = vadd.f32 %v892, %v923
    %925 = vmatmul.f32.gmra.mxu0 %v898
    %v926 = vpop.f32.mrf.mxu0
    %v927 = vadd.f32 %v892, %v926
    %928 = vmatmul.f32.gmra.mxu0 %v901
    %v929 = vpop.f32.mrf.mxu0
    %v930 = vadd.f32 %v892, %v929
    %931 = vmatmul.f32.gmra.mxu0 %v904
    %v932 = vpop.f32.mrf.mxu0
    %v933 = vadd.f32 %v892, %v932
    %934 = vdwg.mxu0
    %v935 = vadd.f32 %v42, %v924
    %v936 = vadd.f32 %v43, %v927
    %v937 = vadd.f32 %v44, %v930
    %v938 = vadd.f32 %v45, %v933
    %v939 = vsel %vm50, %v935, 0.0
    %940 = vadd.xlane.f32.xlu0 %v939
    %v941 = vpop.xlane.xlu0 %940
    %v942 = vsel %vm50, %v936, 0.0
    %943 = vadd.xlane.f32.xlu0 %v942
    %v944 = vpop.xlane.xlu0 %943
    %v945 = vsel %vm50, %v937, 0.0
    %946 = vadd.xlane.f32.xlu0 %v945
    %v947 = vpop.xlane.xlu0 %946
    %v948 = vsel %vm50, %v938, 0.0
    %949 = vadd.xlane.f32.xlu0 %v948
    %v950 = vpop.xlane.xlu0 %949
    %v951 = vmul.f32 %v941, %v69
    %v952 = vmul.f32 %v944, %v69
    %v953 = vmul.f32 %v947, %v69
    %v954 = vmul.f32 %v950, %v69
    %v955 = vsub.f32 %v935, %v951
    %v956 = vsub.f32 %v936, %v952
    %v957 = vsub.f32 %v937, %v953
    %v958 = vsub.f32 %v938, %v954
    %v959 = vmul.f32 %v955, %v955
    %v960 = vmul.f32 %v956, %v956
    %v961 = vmul.f32 %v957, %v957
    %v962 = vmul.f32 %v958, %v958
    %v963 = vsel %vm50, %v959, 0.0
    %964 = vadd.xlane.f32.xlu0 %v963
    %v965 = vpop.xlane.xlu0 %964
    %v966 = vsel %vm50, %v960, 0.0
    %967 = vadd.xlane.f32.xlu0 %v966
    %v968 = vpop.xlane.xlu0 %967
    %v969 = vsel %vm50, %v961, 0.0
    %970 = vadd.xlane.f32.xlu0 %v969
    %v971 = vpop.xlane.xlu0 %970
    %v972 = vsel %vm50, %v962, 0.0
    %973 = vadd.xlane.f32.xlu0 %v972
    %v974 = vpop.xlane.xlu0 %973
    %v975 = vmul.f32 %v965, %v69
    %v976 = vmul.f32 %v968, %v69
    %v977 = vmul.f32 %v971, %v69
    %v978 = vmul.f32 %v974, %v69
    %v979 = vadd.f32 %v975, 1e-05
    %v980 = vadd.f32 %v976, 1e-05
    %v981 = vadd.f32 %v977, 1e-05
    %v982 = vadd.f32 %v978, 1e-05
    %v983 = vrsqrt.pop %v979
    %v984 = vmul.f32 %v983, %v979
    %v985 = vmul.f32 %v984, %v983
    %v986 = vmul.f32 0.5, %v985
    %v987 = vsub.f32 1.5, %v986
    %v988 = vmul.f32 %v983, %v987
    %vm989 = vweird.f32 %v979
    %vm990 = vweird.f32 %v983
    %vm991 = vmor %vm989, %vm990
    %v992 = vsel %vm991, %v983, %v988
    %v993 = vrsqrt.pop %v980
    %v994 = vmul.f32 %v993, %v980
    %v995 = vmul.f32 %v994, %v993
    %v996 = vmul.f32 0.5, %v995
    %v997 = vsub.f32 1.5, %v996
    %v998 = vmul.f32 %v993, %v997
    %vm999 = vweird.f32 %v980
    %vm1000 = vweird.f32 %v993
    %vm1001 = vmor %vm999, %vm1000
    %v1002 = vsel %vm1001, %v993, %v998
    %v1003 = vrsqrt.pop %v981
    %v1004 = vmul.f32 %v1003, %v981
    %v1005 = vmul.f32 %v1004, %v1003
    %v1006 = vmul.f32 0.5, %v1005
    %v1007 = vsub.f32 1.5, %v1006
    %v1008 = vmul.f32 %v1003, %v1007
    %vm1009 = vweird.f32 %v981
    %vm1010 = vweird.f32 %v1003
    %vm1011 = vmor %vm1009, %vm1010
    %v1012 = vsel %vm1011, %v1003, %v1008
    %v1013 = vrsqrt.pop %v982
    %v1014 = vmul.f32 %v1013, %v982
    %v1015 = vmul.f32 %v1014, %v1013
    %v1016 = vmul.f32 0.5, %v1015
    %v1017 = vsub.f32 1.5, %v1016
    %v1018 = vmul.f32 %v1013, %v1017
    %vm1019 = vweird.f32 %v982
    %vm1020 = vweird.f32 %v1013
    %vm1021 = vmor %vm1019, %vm1020
    %v1022 = vsel %vm1021, %v1013, %v1018
    %v1023 = vmul.f32 %v955, %v992
    %v1024 = vmul.f32 %v956, %v1002
    %v1025 = vmul.f32 %v957, %v1012
    %v1026 = vmul.f32 %v958, %v1022
    %v1027 = vld [vmem:[%s6] sm:$0xff]
    %v1028 = vld [vmem:[%s6 + $0x8] sm:$0xff]
    %v1029 = vld [vmem:[%s6 + $0x10] sm:$0xff]
    %v1030 = vld [vmem:[%s6 + $0x18] sm:$0xff]
    %v1031 = vld [vmem:[%s7] sm:$0x1]
    %v1033 = vperm.slane %v1031, 0
    %v1036 = vsel %vm50, %v1023, 0
    %v1039 = vsel %vm50, %v1024, 0
    %v1042 = vsel %vm50, %v1025, 0
    %v1045 = vsel %vm50, %v1026, 0
    %1047 = vmatpush.msra.mxu0 0.0
    %1048 = vmatpush.msra.mxu0 0.0
    %1049 = vmatpush.msra.mxu0 0.0
    %1050 = vmatpush.msra.mxu0 0.0
    %1051 = vmatpush.msra.mxu0 0.0
    %1052 = vmatpush.msra.mxu0 0.0
    %1053 = vmatpush.msra.mxu0 0.0
    %1054 = vmatpush.msra.mxu0 0.0
    %1055 = vmatpush.msra.mxu0 0.0
    %1056 = vmatpush.msra.mxu0 0.0
    %1057 = vmatpush.msra.mxu0 0.0
    %1058 = vmatpush.msra.mxu0 0.0
    %1059 = vmatpush.msra.mxu0 %v1030
    %1060 = vmatpush.msra.mxu0 %v1029
    %1061 = vmatpush.msra.mxu0 %v1028
    %1062 = vmatpush.msra.mxu0 %v1027
    %1063 = vmatmul.f32.gmra.mxu0 %v1036
    %v1064 = vpop.f32.mrf.mxu0
    %v1065 = vadd.f32 %v1033, %v1064
    %1066 = vmatmul.f32.gmra.mxu0 %v1039
    %v1067 = vpop.f32.mrf.mxu0
    %v1068 = vadd.f32 %v1033, %v1067
    %1069 = vmatmul.f32.gmra.mxu0 %v1042
    %v1070 = vpop.f32.mrf.mxu0
    %v1071 = vadd.f32 %v1033, %v1070
    %1072 = vmatmul.f32.gmra.mxu0 %v1045
    %v1073 = vpop.f32.mrf.mxu0
    %v1074 = vadd.f32 %v1033, %v1073
    %1075 = vdwg.mxu0
    %v1076 = vmul.f32 %v1065, %v1065
    %v1077 = vmul.f32 %v1068, %v1068
    %v1078 = vmul.f32 %v1071, %v1071
    %v1079 = vmul.f32 %v1074, %v1074
    %v1080 = vmul.f32 %v1065, %v1076
    %v1081 = vmul.f32 %v1068, %v1077
    %v1082 = vmul.f32 %v1071, %v1078
    %v1083 = vmul.f32 %v1074, %v1079
    %v1084 = vmul.f32 %v1080, 0.044715
    %v1085 = vmul.f32 %v1081, 0.044715
    %v1086 = vmul.f32 %v1082, 0.044715
    %v1087 = vmul.f32 %v1083, 0.044715
    %v1088 = vadd.f32 %v1065, %v1084
    %v1089 = vadd.f32 %v1068, %v1085
    %v1090 = vadd.f32 %v1071, %v1086
    %v1091 = vadd.f32 %v1074, %v1087
    %v1092 = vmul.f32 %v1088, 0.7978846
    %v1093 = vmul.f32 %v1089, 0.7978846
    %v1094 = vmul.f32 %v1090, 0.7978846
    %v1095 = vmul.f32 %v1091, 0.7978846
    %v1096 = vtanh.pop %v1092
    %v1097 = vtanh.pop %v1093
    %v1098 = vtanh.pop %v1094
    %v1099 = vtanh.pop %v1095
    %v1100 = vadd.f32 %v1096, 1.0
    %v1101 = vadd.f32 %v1097, 1.0
    %v1102 = vadd.f32 %v1098, 1.0
    %v1103 = vadd.f32 %v1099, 1.0
    %v1104 = vmul.f32 %v1100, 0.5
    %v1105 = vmul.f32 %v1101, 0.5
    %v1106 = vmul.f32 %v1102, 0.5
    %v1107 = vmul.f32 %v1103, 0.5
    %v1108 = vmul.f32 %v1065, %v1104
    %v1109 = vmul.f32 %v1068, %v1105
    %v1110 = vmul.f32 %v1071, %v1106
    %v1111 = vmul.f32 %v1074, %v1107
    %v1112 = vld [vmem:[%s8] sm:$0xff]
    %v1113 = vld [vmem:[%s8 + $0x8] sm:$0xff]
    %v1114 = vld [vmem:[%s8 + $0x10] sm:$0xff]
    %v1115 = vld [vmem:[%s8 + $0x18] sm:$0xff]
    %v1116 = vld [vmem:[%s8 + $0x20] sm:$0xff]
    %v1117 = vld [vmem:[%s8 + $0x28] sm:$0xff]
    %v1118 = vld [vmem:[%s8 + $0x30] sm:$0xff]
    %v1119 = vld [vmem:[%s8 + $0x38] sm:$0xff]
    %v1120 = vld [vmem:[%s9] sm:$0x1]
    %v1122 = vperm.slane %v1120, 0
    %vm1124 = vcmask 523264
    %v1126 = vsel %vm1124, %v1108, 0
    %v1129 = vsel %vm1124, %v1109, 0
    %v1132 = vsel %vm1124, %v1110, 0
    %v1135 = vsel %vm1124, %v1111, 0
    %1137 = vmatpush.msra.mxu0 0.0
    %1138 = vmatpush.msra.mxu0 0.0
    %1139 = vmatpush.msra.mxu0 0.0
    %1140 = vmatpush.msra.mxu0 0.0
    %1141 = vmatpush.msra.mxu0 0.0
    %1142 = vmatpush.msra.mxu0 0.0
    %1143 = vmatpush.msra.mxu0 0.0
    %1144 = vmatpush.msra.mxu0 0.0
    %1145 = vmatpush.msra.mxu0 %v1119
    %1146 = vmatpush.msra.mxu0 %v1118
    %1147 = vmatpush.msra.mxu0 %v1117
    %1148 = vmatpush.msra.mxu0 %v1116
    %1149 = vmatpush.msra.mxu0 %v1115
    %1150 = vmatpush.msra.mxu0 %v1114
    %1151 = vmatpush.msra.mxu0 %v1113
    %1152 = vmatpush.msra.mxu0 %v1112
    %1153 = vmatmul.f32.gmra.mxu0 %v1126
    %v1154 = vpop.f32.mrf.mxu0
    %v1155 = vadd.f32 %v1122, %v1154
    %1156 = vmatmul.f32.gmra.mxu0 %v1129
    %v1157 = vpop.f32.mrf.mxu0
    %v1158 = vadd.f32 %v1122, %v1157
    %1159 = vmatmul.f32.gmra.mxu0 %v1132
    %v1160 = vpop.f32.mrf.mxu0
    %v1161 = vadd.f32 %v1122, %v1160
    %1162 = vmatmul.f32.gmra.mxu0 %v1135
    %v1163 = vpop.f32.mrf.mxu0
    %v1164 = vadd.f32 %v1122, %v1163
    %1165 = vdwg.mxu0
    %v1166 = vadd.f32 %v935, %v1155
    %v1167 = vadd.f32 %v936, %v1158
    %v1168 = vadd.f32 %v937, %v1161
    %v1169 = vadd.f32 %v938, %v1164
    %v1170 = vsel %vm50, %v1166, 0.0
    %1171 = vadd.xlane.f32.xlu0 %v1170
    %v1172 = vpop.xlane.xlu0 %1171
    %v1173 = vsel %vm50, %v1167, 0.0
    %1174 = vadd.xlane.f32.xlu0 %v1173
    %v1175 = vpop.xlane.xlu0 %1174
    %v1176 = vsel %vm50, %v1168, 0.0
    %1177 = vadd.xlane.f32.xlu0 %v1176
    %v1178 = vpop.xlane.xlu0 %1177
    %v1179 = vsel %vm50, %v1169, 0.0
    %1180 = vadd.xlane.f32.xlu0 %v1179
    %v1181 = vpop.xlane.xlu0 %1180
    %v1182 = vmul.f32 %v1172, %v69
    %v1183 = vmul.f32 %v1175, %v69
    %v1184 = vmul.f32 %v1178, %v69
    %v1185 = vmul.f32 %v1181, %v69
    %v1186 = vsub.f32 %v1166, %v1182
    %v1187 = vsub.f32 %v1167, %v1183
    %v1188 = vsub.f32 %v1168, %v1184
    %v1189 = vsub.f32 %v1169, %v1185
    %v1190 = vmul.f32 %v1186, %v1186
    %v1191 = vmul.f32 %v1187, %v1187
    %v1192 = vmul.f32 %v1188, %v1188
    %v1193 = vmul.f32 %v1189, %v1189
    %v1194 = vsel %vm50, %v1190, 0.0
    %1195 = vadd.xlane.f32.xlu0 %v1194
    %v1196 = vpop.xlane.xlu0 %1195
    %v1197 = vsel %vm50, %v1191, 0.0
    %1198 = vadd.xlane.f32.xlu0 %v1197
    %v1199 = vpop.xlane.xlu0 %1198
    %v1200 = vsel %vm50, %v1192, 0.0
    %1201 = vadd.xlane.f32.xlu0 %v1200
    %v1202 = vpop.xlane.xlu0 %1201
    %v1203 = vsel %vm50, %v1193, 0.0
    %1204 = vadd.xlane.f32.xlu0 %v1203
    %v1205 = vpop.xlane.xlu0 %1204
    %v1206 = vmul.f32 %v1196, %v69
    %v1207 = vmul.f32 %v1199, %v69
    %v1208 = vmul.f32 %v1202, %v69
    %v1209 = vmul.f32 %v1205, %v69
    %v1210 = vadd.f32 %v1206, 1e-05
    %v1211 = vadd.f32 %v1207, 1e-05
    %v1212 = vadd.f32 %v1208, 1e-05
    %v1213 = vadd.f32 %v1209, 1e-05
    %v1214 = vrsqrt.pop %v1210
    %v1215 = vmul.f32 %v1214, %v1210
    %v1216 = vmul.f32 %v1215, %v1214
    %v1217 = vmul.f32 0.5, %v1216
    %v1218 = vsub.f32 1.5, %v1217
    %v1219 = vmul.f32 %v1214, %v1218
    %vm1220 = vweird.f32 %v1210
    %vm1221 = vweird.f32 %v1214
    %vm1222 = vmor %vm1220, %vm1221
    %v1223 = vsel %vm1222, %v1214, %v1219
    %v1224 = vrsqrt.pop %v1211
    %v1225 = vmul.f32 %v1224, %v1211
    %v1226 = vmul.f32 %v1225, %v1224
    %v1227 = vmul.f32 0.5, %v1226
    %v1228 = vsub.f32 1.5, %v1227
    %v1229 = vmul.f32 %v1224, %v1228
    %vm1230 = vweird.f32 %v1211
    %vm1231 = vweird.f32 %v1224
    %vm1232 = vmor %vm1230, %vm1231
    %v1233 = vsel %vm1232, %v1224, %v1229
    %v1234 = vrsqrt.pop %v1212
    %v1235 = vmul.f32 %v1234, %v1212
    %v1236 = vmul.f32 %v1235, %v1234
    %v1237 = vmul.f32 0.5, %v1236
    %v1238 = vsub.f32 1.5, %v1237
    %v1239 = vmul.f32 %v1234, %v1238
    %vm1240 = vweird.f32 %v1212
    %vm1241 = vweird.f32 %v1234
    %vm1242 = vmor %vm1240, %vm1241
    %v1243 = vsel %vm1242, %v1234, %v1239
    %v1244 = vrsqrt.pop %v1213
    %v1245 = vmul.f32 %v1244, %v1213
    %v1246 = vmul.f32 %v1245, %v1244
    %v1247 = vmul.f32 0.5, %v1246
    %v1248 = vsub.f32 1.5, %v1247
    %v1249 = vmul.f32 %v1244, %v1248
    %vm1250 = vweird.f32 %v1213
    %vm1251 = vweird.f32 %v1244
    %vm1252 = vmor %vm1250, %vm1251
    %v1253 = vsel %vm1252, %v1244, %v1249
    %v1254 = vmul.f32 %v1186, %v1223
    %v1255 = vmul.f32 %v1187, %v1233
    %v1256 = vmul.f32 %v1188, %v1243
    %v1257 = vmul.f32 %v1189, %v1253
    %s1258 = scalar_lea.vmem %s2, 32
    %v1259 = vld [vmem:[%s1258] sm:$0xff]
    %v1260 = vld [vmem:[%s1258 + $0x8] sm:$0xff]
    %v1261 = vld [vmem:[%s1258 + $0x10] sm:$0xff]
    %v1262 = vld [vmem:[%s1258 + $0x18] sm:$0xff]
    %s1263 = scalar_lea.vmem %s3, 1
    %v1264 = vld [vmem:[%s1263] sm:$0x1]
    %v1266 = vperm.slane %v1264, 0
    %v1269 = vsel %vm50, %v1254, 0
    %v1272 = vsel %vm50, %v1255, 0
    %v1275 = vsel %vm50, %v1256, 0
    %v1278 = vsel %vm50, %v1257, 0
    %1280 = vmatpush.msra.mxu0 0.0
    %1281 = vmatpush.msra.mxu0 0.0
    %1282 = vmatpush.msra.mxu0 0.0
    %1283 = vmatpush.msra.mxu0 0.0
    %1284 = vmatpush.msra.mxu0 0.0
    %1285 = vmatpush.msra.mxu0 0.0
    %1286 = vmatpush.msra.mxu0 0.0
    %1287 = vmatpush.msra.mxu0 0.0
    %1288 = vmatpush.msra.mxu0 0.0
    %1289 = vmatpush.msra.mxu0 0.0
    %1290 = vmatpush.msra.mxu0 0.0
    %1291 = vmatpush.msra.mxu0 0.0
    %1292 = vmatpush.msra.mxu0 %v1262
    %1293 = vmatpush.msra.mxu0 %v1261
    %1294 = vmatpush.msra.mxu0 %v1260
    %1295 = vmatpush.msra.mxu0 %v1259
    %1296 = vmatmul.f32.gmra.mxu0 %v1269
    %v1297 = vpop.f32.mrf.mxu0
    %v1298 = vadd.f32 %v1266, %v1297
    %1299 = vmatmul.f32.gmra.mxu0 %v1272
    %v1300 = vpop.f32.mrf.mxu0
    %v1301 = vadd.f32 %v1266, %v1300
    %1302 = vmatmul.f32.gmra.mxu0 %v1275
    %v1303 = vpop.f32.mrf.mxu0
    %v1304 = vadd.f32 %v1266, %v1303
    %1305 = vmatmul.f32.gmra.mxu0 %v1278
    %v1306 = vpop.f32.mrf.mxu0
    %v1307 = vadd.f32 %v1266, %v1306
    %1308 = vdwg.mxu0
    %1313 = vrot.lane.b32.xlu0 %v1298, 96
    %v1314 = vpop.permute.xlu0 %1313
    %1315 = vrot.lane.b32.xlu0 %v1301, 96
    %v1316 = vpop.permute.xlu0 %1315
    %1317 = vrot.lane.b32.xlu0 %v1304, 96
    %v1318 = vpop.permute.xlu0 %1317
    %1319 = vrot.lane.b32.xlu0 %v1307, 96
    %v1320 = vpop.permute.xlu0 %1319
    %v1321 = vsel %vm207, %v1298, 0
    %v1323 = vsel %vm207, %v1301, 0
    %v1325 = vsel %vm207, %v1304, 0
    %v1327 = vsel %vm207, %v1307, 0
    %v1329 = vsel %vm207, %v1314, 0
    %v1331 = vsel %vm207, %v1316, 0
    %v1333 = vsel %vm207, %v1318, 0
    %v1335 = vsel %vm207, %v1320, 0
    %1337 = vmatpush.xpose.msra.mxu0 0.0
    %1338 = vmatpush.xpose.msra.mxu0 0.0
    %1339 = vmatpush.xpose.msra.mxu0 0.0
    %1340 = vmatpush.xpose.msra.mxu0 0.0
    %1341 = vmatpush.xpose.msra.mxu0 0.0
    %1342 = vmatpush.xpose.msra.mxu0 0.0
    %1343 = vmatpush.xpose.msra.mxu0 0.0
    %1344 = vmatpush.xpose.msra.mxu0 0.0
    %1345 = vmatpush.xpose.msra.mxu0 0.0
    %1346 = vmatpush.xpose.msra.mxu0 0.0
    %1347 = vmatpush.xpose.msra.mxu0 0.0
    %1348 = vmatpush.xpose.msra.mxu0 0.0
    %1349 = vmatpush.xpose.msra.mxu0 %v1335
    %1350 = vmatpush.xpose.msra.mxu0 %v1333
    %1351 = vmatpush.xpose.msra.mxu0 %v1331
    %1352 = vmatpush.xpose.msra.mxu0 %v1329
    %1353 = vmatmul.f32.gmra.mxu0 %v1321
    %v1354 = vpop.f32.mrf.mxu0
    %v1355 = vadd.f32 %v46, %v1354
    %1356 = vmatmul.f32.gmra.mxu0 %v1323
    %v1357 = vpop.f32.mrf.mxu0
    %v1358 = vadd.f32 %v47, %v1357
    %1359 = vmatmul.f32.gmra.mxu0 %v1325
    %v1360 = vpop.f32.mrf.mxu0
    %v1361 = vadd.f32 %v48, %v1360
    %1362 = vmatmul.f32.gmra.mxu0 %v1327
    %v1363 = vpop.f32.mrf.mxu0
    %v1364 = vadd.f32 %v49, %v1363
    %1365 = vdwg.mxu0
    %v1366 = vsel %vm50, %v1355, -inf
    %1367 = vmax.xlane.f32.xlu0 %v1366
    %v1368 = vpop.xlane.xlu0 %1367
    %v1369 = vsel %vm50, %v1358, -inf
    %1370 = vmax.xlane.f32.xlu0 %v1369
    %v1371 = vpop.xlane.xlu0 %1370
    %v1372 = vsel %vm50, %v1361, -inf
    %1373 = vmax.xlane.f32.xlu0 %v1372
    %v1374 = vpop.xlane.xlu0 %1373
    %v1375 = vsel %vm50, %v1364, -inf
    %1376 = vmax.xlane.f32.xlu0 %v1375
    %v1377 = vpop.xlane.xlu0 %1376
    %v1378 = vsub.f32 %v1355, %v1368
    %v1379 = vsub.f32 %v1358, %v1371
    %v1380 = vsub.f32 %v1361, %v1374
    %v1381 = vsub.f32 %v1364, %v1377
    %v1382 = vmul.f32 %v1378, 1.442695
    %v1383 = vpow.pop %v1382
    %v1384 = vmul.f32 %v1379, 1.442695
    %v1385 = vpow.pop %v1384
    %v1386 = vmul.f32 %v1380, 1.442695
    %v1387 = vpow.pop %v1386
    %v1388 = vmul.f32 %v1381, 1.442695
    %v1389 = vpow.pop %v1388
    %v1390 = vsel %vm50, %v1383, 0.0
    %1391 = vadd.xlane.f32.xlu0 %v1390
    %v1392 = vpop.xlane.xlu0 %1391
    %v1393 = vsel %vm50, %v1385, 0.0
    %1394 = vadd.xlane.f32.xlu0 %v1393
    %v1395 = vpop.xlane.xlu0 %1394
    %v1396 = vsel %vm50, %v1387, 0.0
    %1397 = vadd.xlane.f32.xlu0 %v1396
    %v1398 = vpop.xlane.xlu0 %1397
    %v1399 = vsel %vm50, %v1389, 0.0
    %1400 = vadd.xlane.f32.xlu0 %v1399
    %v1401 = vpop.xlane.xlu0 %1400
    %v1402 = vrcp.pop %v1392
    %v1403 = vrcp.pop %v1395
    %v1404 = vrcp.pop %v1398
    %v1405 = vrcp.pop %v1401
    %v1406 = vmul.f32 %v1383, %v1402
    %v1407 = vmul.f32 %v1385, %v1403
    %v1408 = vmul.f32 %v1387, %v1404
    %v1409 = vmul.f32 %v1389, %v1405
    %1410 = vrot.lane.b32.xlu0 %v1298, 64
    %v1411 = vpop.permute.xlu0 %1410
    %1412 = vrot.lane.b32.xlu0 %v1301, 64
    %v1413 = vpop.permute.xlu0 %1412
    %1414 = vrot.lane.b32.xlu0 %v1304, 64
    %v1415 = vpop.permute.xlu0 %1414
    %1416 = vrot.lane.b32.xlu0 %v1307, 64
    %v1417 = vpop.permute.xlu0 %1416
    %v1423 = vsel %vm50, %v1406, 0
    %v1426 = vsel %vm50, %v1407, 0
    %v1429 = vsel %vm50, %v1408, 0
    %v1432 = vsel %vm50, %v1409, 0
    %1434 = vmatpush.msra.mxu0 0.0
    %1435 = vmatpush.msra.mxu0 0.0
    %1436 = vmatpush.msra.mxu0 0.0
    %1437 = vmatpush.msra.mxu0 0.0
    %1438 = vmatpush.msra.mxu0 0.0
    %1439 = vmatpush.msra.mxu0 0.0
    %1440 = vmatpush.msra.mxu0 0.0
    %1441 = vmatpush.msra.mxu0 0.0
    %1442 = vmatpush.msra.mxu0 0.0
    %1443 = vmatpush.msra.mxu0 0.0
    %1444 = vmatpush.msra.mxu0 0.0
    %1445 = vmatpush.msra.mxu0 0.0
    %1446 = vmatpush.msra.mxu0 %v1417
    %1447 = vmatpush.msra.mxu0 %v1415
    %1448 = vmatpush.msra.mxu0 %v1413
    %1449 = vmatpush.msra.mxu0 %v1411
    %1450 = vmatmul.f32.gmra.mxu0 %v1423
    %v1451 = vpop.f32.mrf.mxu0
    %v1452 = vadd.f32 0.0, %v1451
    %1453 = vmatmul.f32.gmra.mxu0 %v1426
    %v1454 = vpop.f32.mrf.mxu0
    %v1455 = vadd.f32 0.0, %v1454
    %1456 = vmatmul.f32.gmra.mxu0 %v1429
    %v1457 = vpop.f32.mrf.mxu0
    %v1458 = vadd.f32 0.0, %v1457
    %1459 = vmatmul.f32.gmra.mxu0 %v1432
    %v1460 = vpop.f32.mrf.mxu0
    %v1461 = vadd.f32 0.0, %v1460
    %1462 = vdwg.mxu0
    %1463 = vrot.lane.b32.xlu0 %v1298, 120
    %v1464 = vpop.permute.xlu0 %1463
    %1465 = vrot.lane.b32.xlu0 %v1301, 120
    %v1466 = vpop.permute.xlu0 %1465
    %1467 = vrot.lane.b32.xlu0 %v1304, 120
    %v1468 = vpop.permute.xlu0 %1467
    %1469 = vrot.lane.b32.xlu0 %v1307, 120
    %v1470 = vpop.permute.xlu0 %1469
    %1471 = vrot.lane.b32.xlu0 %v1298, 88
    %v1472 = vpop.permute.xlu0 %1471
    %1473 = vrot.lane.b32.xlu0 %v1301, 88
    %v1474 = vpop.permute.xlu0 %1473
    %1475 = vrot.lane.b32.xlu0 %v1304, 88
    %v1476 = vpop.permute.xlu0 %1475
    %1477 = vrot.lane.b32.xlu0 %v1307, 88
    %v1478 = vpop.permute.xlu0 %1477
    %v1479 = vsel %vm207, %v1464, 0
    %v1481 = vsel %vm207, %v1466, 0
    %v1483 = vsel %vm207, %v1468, 0
    %v1485 = vsel %vm207, %v1470, 0
    %v1487 = vsel %vm207, %v1472, 0
    %v1489 = vsel %vm207, %v1474, 0
    %v1491 = vsel %vm207, %v1476, 0
    %v1493 = vsel %vm207, %v1478, 0
    %1495 = vmatpush.xpose.msra.mxu0 0.0
    %1496 = vmatpush.xpose.msra.mxu0 0.0
    %1497 = vmatpush.xpose.msra.mxu0 0.0
    %1498 = vmatpush.xpose.msra.mxu0 0.0
    %1499 = vmatpush.xpose.msra.mxu0 0.0
    %1500 = vmatpush.xpose.msra.mxu0 0.0
    %1501 = vmatpush.xpose.msra.mxu0 0.0
    %1502 = vmatpush.xpose.msra.mxu0 0.0
    %1503 = vmatpush.xpose.msra.mxu0 0.0
    %1504 = vmatpush.xpose.msra.mxu0 0.0
    %1505 = vmatpush.xpose.msra.mxu0 0.0
    %1506 = vmatpush.xpose.msra.mxu0 0.0
    %1507 = vmatpush.xpose.msra.mxu0 %v1493
    %1508 = vmatpush.xpose.msra.mxu0 %v1491
    %1509 = vmatpush.xpose.msra.mxu0 %v1489
    %1510 = vmatpush.xpose.msra.mxu0 %v1487
    %1511 = vmatmul.f32.gmra.mxu0 %v1479
    %v1512 = vpop.f32.mrf.mxu0
    %v1513 = vadd.f32 %v46, %v1512
    %1514 = vmatmul.f32.gmra.mxu0 %v1481
    %v1515 = vpop.f32.mrf.mxu0
    %v1516 = vadd.f32 %v47, %v1515
    %1517 = vmatmul.f32.gmra.mxu0 %v1483
    %v1518 = vpop.f32.mrf.mxu0
    %v1519 = vadd.f32 %v48, %v1518
    %1520 = vmatmul.f32.gmra.mxu0 %v1485
    %v1521 = vpop.f32.mrf.mxu0
    %v1522 = vadd.f32 %v49, %v1521
    %1523 = vdwg.mxu0
    %v1524 = vsel %vm50, %v1513, -inf
    %1525 = vmax.xlane.f32.xlu0 %v1524
    %v1526 = vpop.xlane.xlu0 %1525
    %v1527 = vsel %vm50, %v1516, -inf
    %1528 = vmax.xlane.f32.xlu0 %v1527
    %v1529 = vpop.xlane.xlu0 %1528
    %v1530 = vsel %vm50, %v1519, -inf
    %1531 = vmax.xlane.f32.xlu0 %v1530
    %v1532 = vpop.xlane.xlu0 %1531
    %v1533 = vsel %vm50, %v1522, -inf
    %1534 = vmax.xlane.f32.xlu0 %v1533
    %v1535 = vpop.xlane.xlu0 %1534
    %v1536 = vsub.f32 %v1513, %v1526
    %v1537 = vsub.f32 %v1516, %v1529
    %v1538 = vsub.f32 %v1519, %v1532
    %v1539 = vsub.f32 %v1522, %v1535
    %v1540 = vmul.f32 %v1536, 1.442695
    %v1541 = vpow.pop %v1540
    %v1542 = vmul.f32 %v1537, 1.442695
    %v1543 = vpow.pop %v1542
    %v1544 = vmul.f32 %v1538, 1.442695
    %v1545 = vpow.pop %v1544
    %v1546 = vmul.f32 %v1539, 1.442695
    %v1547 = vpow.pop %v1546
    %v1548 = vsel %vm50, %v1541, 0.0
    %1549 = vadd.xlane.f32.xlu0 %v1548
    %v1550 = vpop.xlane.xlu0 %1549
    %v1551 = vsel %vm50, %v1543, 0.0
    %1552 = vadd.xlane.f32.xlu0 %v1551
    %v1553 = vpop.xlane.xlu0 %1552
    %v1554 = vsel %vm50, %v1545, 0.0
    %1555 = vadd.xlane.f32.xlu0 %v1554
    %v1556 = vpop.xlane.xlu0 %1555
    %v1557 = vsel %vm50, %v1547, 0.0
    %1558 = vadd.xlane.f32.xlu0 %v1557
    %v1559 = vpop.xlane.xlu0 %1558
    %v1560 = vrcp.pop %v1550
    %v1561 = vrcp.pop %v1553
    %v1562 = vrcp.pop %v1556
    %v1563 = vrcp.pop %v1559
    %v1564 = vmul.f32 %v1541, %v1560
    %v1565 = vmul.f32 %v1543, %v1561
    %v1566 = vmul.f32 %v1545, %v1562
    %v1567 = vmul.f32 %v1547, %v1563
    %1568 = vrot.lane.b32.xlu0 %v1298, 56
    %v1569 = vpop.permute.xlu0 %1568
    %1570 = vrot.lane.b32.xlu0 %v1301, 56
    %v1571 = vpop.permute.xlu0 %1570
    %1572 = vrot.lane.b32.xlu0 %v1304, 56
    %v1573 = vpop.permute.xlu0 %1572
    %1574 = vrot.lane.b32.xlu0 %v1307, 56
    %v1575 = vpop.permute.xlu0 %1574
    %v1581 = vsel %vm50, %v1564, 0
    %v1584 = vsel %vm50, %v1565, 0
    %v1587 = vsel %vm50, %v1566, 0
    %v1590 = vsel %vm50, %v1567, 0
    %1592 = vmatpush.msra.mxu0 0.0
    %1593 = vmatpush.msra.mxu0 0.0
    %1594 = vmatpush.msra.mxu0 0.0
    %1595 = vmatpush.msra.mxu0 0.0
    %1596 = vmatpush.msra.mxu0 0.0
    %1597 = vmatpush.msra.mxu0 0.0
    %1598 = vmatpush.msra.mxu0 0.0
    %1599 = vmatpush.msra.mxu0 0.0
    %1600 = vmatpush.msra.mxu0 0.0
    %1601 = vmatpush.msra.mxu0 0.0
    %1602 = vmatpush.msra.mxu0 0.0
    %1603 = vmatpush.msra.mxu0 0.0
    %1604 = vmatpush.msra.mxu0 %v1575
    %1605 = vmatpush.msra.mxu0 %v1573
    %1606 = vmatpush.msra.mxu0 %v1571
    %1607 = vmatpush.msra.mxu0 %v1569
    %1608 = vmatmul.f32.gmra.mxu0 %v1581
    %v1609 = vpop.f32.mrf.mxu0
    %v1610 = vadd.f32 0.0, %v1609
    %1611 = vmatmul.f32.gmra.mxu0 %v1584
    %v1612 = vpop.f32.mrf.mxu0
    %v1613 = vadd.f32 0.0, %v1612
    %1614 = vmatmul.f32.gmra.mxu0 %v1587
    %v1615 = vpop.f32.mrf.mxu0
    %v1616 = vadd.f32 0.0, %v1615
    %1617 = vmatmul.f32.gmra.mxu0 %v1590
    %v1618 = vpop.f32.mrf.mxu0
    %v1619 = vadd.f32 0.0, %v1618
    %1620 = vdwg.mxu0
    %1621 = vrot.lane.b32.xlu0 %v1298, 112
    %v1622 = vpop.permute.xlu0 %1621
    %1623 = vrot.lane.b32.xlu0 %v1301, 112
    %v1624 = vpop.permute.xlu0 %1623
    %1625 = vrot.lane.b32.xlu0 %v1304, 112
    %v1626 = vpop.permute.xlu0 %1625
    %1627 = vrot.lane.b32.xlu0 %v1307, 112
    %v1628 = vpop.permute.xlu0 %1627
    %1629 = vrot.lane.b32.xlu0 %v1298, 80
    %v1630 = vpop.permute.xlu0 %1629
    %1631 = vrot.lane.b32.xlu0 %v1301, 80
    %v1632 = vpop.permute.xlu0 %1631
    %1633 = vrot.lane.b32.xlu0 %v1304, 80
    %v1634 = vpop.permute.xlu0 %1633
    %1635 = vrot.lane.b32.xlu0 %v1307, 80
    %v1636 = vpop.permute.xlu0 %1635
    %v1637 = vsel %vm207, %v1622, 0
    %v1639 = vsel %vm207, %v1624, 0
    %v1641 = vsel %vm207, %v1626, 0
    %v1643 = vsel %vm207, %v1628, 0
    %v1645 = vsel %vm207, %v1630, 0
    %v1647 = vsel %vm207, %v1632, 0
    %v1649 = vsel %vm207, %v1634, 0
    %v1651 = vsel %vm207, %v1636, 0
    %1653 = vmatpush.xpose.msra.mxu0 0.0
    %1654 = vmatpush.xpose.msra.mxu0 0.0
    %1655 = vmatpush.xpose.msra.mxu0 0.0
    %1656 = vmatpush.xpose.msra.mxu0 0.0
    %1657 = vmatpush.xpose.msra.mxu0 0.0
    %1658 = vmatpush.xpose.msra.mxu0 0.0
    %1659 = vmatpush.xpose.msra.mxu0 0.0
    %1660 = vmatpush.xpose.msra.mxu0 0.0
    %1661 = vmatpush.xpose.msra.mxu0 0.0
    %1662 = vmatpush.xpose.msra.mxu0 0.0
    %1663 = vmatpush.xpose.msra.mxu0 0.0
    %1664 = vmatpush.xpose.msra.mxu0 0.0
    %1665 = vmatpush.xpose.msra.mxu0 %v1651
    %1666 = vmatpush.xpose.msra.mxu0 %v1649
    %1667 = vmatpush.xpose.msra.mxu0 %v1647
    %1668 = vmatpush.xpose.msra.mxu0 %v1645
    %1669 = vmatmul.f32.gmra.mxu0 %v1637
    %v1670 = vpop.f32.mrf.mxu0
    %v1671 = vadd.f32 %v46, %v1670
    %1672 = vmatmul.f32.gmra.mxu0 %v1639
    %v1673 = vpop.f32.mrf.mxu0
    %v1674 = vadd.f32 %v47, %v1673
    %1675 = vmatmul.f32.gmra.mxu0 %v1641
    %v1676 = vpop.f32.mrf.mxu0
    %v1677 = vadd.f32 %v48, %v1676
    %1678 = vmatmul.f32.gmra.mxu0 %v1643
    %v1679 = vpop.f32.mrf.mxu0
    %v1680 = vadd.f32 %v49, %v1679
    %1681 = vdwg.mxu0
    %v1682 = vsel %vm50, %v1671, -inf
    %1683 = vmax.xlane.f32.xlu0 %v1682
    %v1684 = vpop.xlane.xlu0 %1683
    %v1685 = vsel %vm50, %v1674, -inf
    %1686 = vmax.xlane.f32.xlu0 %v1685
    %v1687 = vpop.xlane.xlu0 %1686
    %v1688 = vsel %vm50, %v1677, -inf
    %1689 = vmax.xlane.f32.xlu0 %v1688
    %v1690 = vpop.xlane.xlu0 %1689
    %v1691 = vsel %vm50, %v1680, -inf
    %1692 = vmax.xlane.f32.xlu0 %v1691
    %v1693 = vpop.xlane.xlu0 %1692
    %v1694 = vsub.f32 %v1671, %v1684
    %v1695 = vsub.f32 %v1674, %v1687
    %v1696 = vsub.f32 %v1677, %v1690
    %v1697 = vsub.f32 %v1680, %v1693
    %v1698 = vmul.f32 %v1694, 1.442695
    %v1699 = vpow.pop %v1698
    %v1700 = vmul.f32 %v1695, 1.442695
    %v1701 = vpow.pop %v1700
    %v1702 = vmul.f32 %v1696, 1.442695
    %v1703 = vpow.pop %v1702
    %v1704 = vmul.f32 %v1697, 1.442695
    %v1705 = vpow.pop %v1704
    %v1706 = vsel %vm50, %v1699, 0.0
    %1707 = vadd.xlane.f32.xlu0 %v1706
    %v1708 = vpop.xlane.xlu0 %1707
    %v1709 = vsel %vm50, %v1701, 0.0
    %1710 = vadd.xlane.f32.xlu0 %v1709
    %v1711 = vpop.xlane.xlu0 %1710
    %v1712 = vsel %vm50, %v1703, 0.0
    %1713 = vadd.xlane.f32.xlu0 %v1712
    %v1714 = vpop.xlane.xlu0 %1713
    %v1715 = vsel %vm50, %v1705, 0.0
    %1716 = vadd.xlane.f32.xlu0 %v1715
    %v1717 = vpop.xlane.xlu0 %1716
    %v1718 = vrcp.pop %v1708
    %v1719 = vrcp.pop %v1711
    %v1720 = vrcp.pop %v1714
    %v1721 = vrcp.pop %v1717
    %v1722 = vmul.f32 %v1699, %v1718
    %v1723 = vmul.f32 %v1701, %v1719
    %v1724 = vmul.f32 %v1703, %v1720
    %v1725 = vmul.f32 %v1705, %v1721
    %1726 = vrot.lane.b32.xlu0 %v1298, 48
    %v1727 = vpop.permute.xlu0 %1726
    %1728 = vrot.lane.b32.xlu0 %v1301, 48
    %v1729 = vpop.permute.xlu0 %1728
    %1730 = vrot.lane.b32.xlu0 %v1304, 48
    %v1731 = vpop.permute.xlu0 %1730
    %1732 = vrot.lane.b32.xlu0 %v1307, 48
    %v1733 = vpop.permute.xlu0 %1732
    %v1739 = vsel %vm50, %v1722, 0
    %v1742 = vsel %vm50, %v1723, 0
    %v1745 = vsel %vm50, %v1724, 0
    %v1748 = vsel %vm50, %v1725, 0
    %1750 = vmatpush.msra.mxu0 0.0
    %1751 = vmatpush.msra.mxu0 0.0
    %1752 = vmatpush.msra.mxu0 0.0
    %1753 = vmatpush.msra.mxu0 0.0
    %1754 = vmatpush.msra.mxu0 0.0
    %1755 = vmatpush.msra.mxu0 0.0
    %1756 = vmatpush.msra.mxu0 0.0
    %1757 = vmatpush.msra.mxu0 0.0
    %1758 = vmatpush.msra.mxu0 0.0
    %1759 = vmatpush.msra.mxu0 0.0
    %1760 = vmatpush.msra.mxu0 0.0
    %1761 = vmatpush.msra.mxu0 0.0
    %1762 = vmatpush.msra.mxu0 %v1733
    %1763 = vmatpush.msra.mxu0 %v1731
    %1764 = vmatpush.msra.mxu0 %v1729
    %1765 = vmatpush.msra.mxu0 %v1727
    %1766 = vmatmul.f32.gmra.mxu0 %v1739
    %v1767 = vpop.f32.mrf.mxu0
    %v1768 = vadd.f32 0.0, %v1767
    %1769 = vmatmul.f32.gmra.mxu0 %v1742
    %v1770 = vpop.f32.mrf.mxu0
    %v1771 = vadd.f32 0.0, %v1770
    %1772 = vmatmul.f32.gmra.mxu0 %v1745
    %v1773 = vpop.f32.mrf.mxu0
    %v1774 = vadd.f32 0.0, %v1773
    %1775 = vmatmul.f32.gmra.mxu0 %v1748
    %v1776 = vpop.f32.mrf.mxu0
    %v1777 = vadd.f32 0.0, %v1776
    %1778 = vdwg.mxu0
    %1779 = vrot.lane.b32.xlu0 %v1298, 104
    %v1780 = vpop.permute.xlu0 %1779
    %1781 = vrot.lane.b32.xlu0 %v1301, 104
    %v1782 = vpop.permute.xlu0 %1781
    %1783 = vrot.lane.b32.xlu0 %v1304, 104
    %v1784 = vpop.permute.xlu0 %1783
    %1785 = vrot.lane.b32.xlu0 %v1307, 104
    %v1786 = vpop.permute.xlu0 %1785
    %1787 = vrot.lane.b32.xlu0 %v1298, 72
    %v1788 = vpop.permute.xlu0 %1787
    %1789 = vrot.lane.b32.xlu0 %v1301, 72
    %v1790 = vpop.permute.xlu0 %1789
    %1791 = vrot.lane.b32.xlu0 %v1304, 72
    %v1792 = vpop.permute.xlu0 %1791
    %1793 = vrot.lane.b32.xlu0 %v1307, 72
    %v1794 = vpop.permute.xlu0 %1793
    %v1795 = vsel %vm207, %v1780, 0
    %v1797 = vsel %vm207, %v1782, 0
    %v1799 = vsel %vm207, %v1784, 0
    %v1801 = vsel %vm207, %v1786, 0
    %v1803 = vsel %vm207, %v1788, 0
    %v1805 = vsel %vm207, %v1790, 0
    %v1807 = vsel %vm207, %v1792, 0
    %v1809 = vsel %vm207, %v1794, 0
    %1811 = vmatpush.xpose.msra.mxu0 0.0
    %1812 = vmatpush.xpose.msra.mxu0 0.0
    %1813 = vmatpush.xpose.msra.mxu0 0.0
    %1814 = vmatpush.xpose.msra.mxu0 0.0
    %1815 = vmatpush.xpose.msra.mxu0 0.0
    %1816 = vmatpush.xpose.msra.mxu0 0.0
    %1817 = vmatpush.xpose.msra.mxu0 0.0
    %1818 = vmatpush.xpose.msra.mxu0 0.0
    %1819 = vmatpush.xpose.msra.mxu0 0.0
    %1820 = vmatpush.xpose.msra.mxu0 0.0
    %1821 = vmatpush.xpose.msra.mxu0 0.0
    %1822 = vmatpush.xpose.msra.mxu0 0.0
    %1823 = vmatpush.xpose.msra.mxu0 %v1809
    %1824 = vmatpush.xpose.msra.mxu0 %v1807
    %1825 = vmatpush.xpose.msra.mxu0 %v1805
    %1826 = vmatpush.xpose.msra.mxu0 %v1803
    %1827 = vmatmul.f32.gmra.mxu0 %v1795
    %v1828 = vpop.f32.mrf.mxu0
    %v1829 = vadd.f32 %v46, %v1828
    %1830 = vmatmul.f32.gmra.mxu0 %v1797
    %v1831 = vpop.f32.mrf.mxu0
    %v1832 = vadd.f32 %v47, %v1831
    %1833 = vmatmul.f32.gmra.mxu0 %v1799
    %v1834 = vpop.f32.mrf.mxu0
    %v1835 = vadd.f32 %v48, %v1834
    %1836 = vmatmul.f32.gmra.mxu0 %v1801
    %v1837 = vpop.f32.mrf.mxu0
    %v1838 = vadd.f32 %v49, %v1837
    %1839 = vdwg.mxu0
    %v1840 = vsel %vm50, %v1829, -inf
    %1841 = vmax.xlane.f32.xlu0 %v1840
    %v1842 = vpop.xlane.xlu0 %1841
    %v1843 = vsel %vm50, %v1832, -inf
    %1844 = vmax.xlane.f32.xlu0 %v1843
    %v1845 = vpop.xlane.xlu0 %1844
    %v1846 = vsel %vm50, %v1835, -inf
    %1847 = vmax.xlane.f32.xlu0 %v1846
    %v1848 = vpop.xlane.xlu0 %1847
    %v1849 = vsel %vm50, %v1838, -inf
    %1850 = vmax.xlane.f32.xlu0 %v1849
    %v1851 = vpop.xlane.xlu0 %1850
    %v1852 = vsub.f32 %v1829, %v1842
    %v1853 = vsub.f32 %v1832, %v1845
    %v1854 = vsub.f32 %v1835, %v1848
    %v1855 = vsub.f32 %v1838, %v1851
    %v1856 = vmul.f32 %v1852, 1.442695
    %v1857 = vpow.pop %v1856
    %v1858 = vmul.f32 %v1853, 1.442695
    %v1859 = vpow.pop %v1858
    %v1860 = vmul.f32 %v1854, 1.442695
    %v1861 = vpow.pop %v1860
    %v1862 = vmul.f32 %v1855, 1.442695
    %v1863 = vpow.pop %v1862
    %v1864 = vsel %vm50, %v1857, 0.0
    %1865 = vadd.xlane.f32.xlu0 %v1864
    %v1866 = vpop.xlane.xlu0 %1865
    %v1867 = vsel %vm50, %v1859, 0.0
    %1868 = vadd.xlane.f32.xlu0 %v1867
    %v1869 = vpop.xlane.xlu0 %1868
    %v1870 = vsel %vm50, %v1861, 0.0
    %1871 = vadd.xlane.f32.xlu0 %v1870
    %v1872 = vpop.xlane.xlu0 %1871
    %v1873 = vsel %vm50, %v1863, 0.0
    %1874 = vadd.xlane.f32.xlu0 %v1873
    %v1875 = vpop.xlane.xlu0 %1874
    %v1876 = vrcp.pop %v1866
    %v1877 = vrcp.pop %v1869
    %v1878 = vrcp.pop %v1872
    %v1879 = vrcp.pop %v1875
    %v1880 = vmul.f32 %v1857, %v1876
    %v1881 = vmul.f32 %v1859, %v1877
    %v1882 = vmul.f32 %v1861, %v1878
    %v1883 = vmul.f32 %v1863, %v1879
    %1884 = vrot.lane.b32.xlu0 %v1298, 40
    %v1885 = vpop.permute.xlu0 %1884
    %1886 = vrot.lane.b32.xlu0 %v1301, 40
    %v1887 = vpop.permute.xlu0 %1886
    %1888 = vrot.lane.b32.xlu0 %v1304, 40
    %v1889 = vpop.permute.xlu0 %1888
    %1890 = vrot.lane.b32.xlu0 %v1307, 40
    %v1891 = vpop.permute.xlu0 %1890
    %v1897 = vsel %vm50, %v1880, 0
    %v1900 = vsel %vm50, %v1881, 0
    %v1903 = vsel %vm50, %v1882, 0
    %v1906 = vsel %vm50, %v1883, 0
    %1908 = vmatpush.msra.mxu0 0.0
    %1909 = vmatpush.msra.mxu0 0.0
    %1910 = vmatpush.msra.mxu0 0.0
    %1911 = vmatpush.msra.mxu0 0.0
    %1912 = vmatpush.msra.mxu0 0.0
    %1913 = vmatpush.msra.mxu0 0.0
    %1914 = vmatpush.msra.mxu0 0.0
    %1915 = vmatpush.msra.mxu0 0.0
    %1916 = vmatpush.msra.mxu0 0.0
    %1917 = vmatpush.msra.mxu0 0.0
    %1918 = vmatpush.msra.mxu0 0.0
    %1919 = vmatpush.msra.mxu0 0.0
    %1920 = vmatpush.msra.mxu0 %v1891
    %1921 = vmatpush.msra.mxu0 %v1889
    %1922 = vmatpush.msra.mxu0 %v1887
    %1923 = vmatpush.msra.mxu0 %v1885
    %1924 = vmatmul.f32.gmra.mxu0 %v1897
    %v1925 = vpop.f32.mrf.mxu0
    %v1926 = vadd.f32 0.0, %v1925
    %1927 = vmatmul.f32.gmra.mxu0 %v1900
    %v1928 = vpop.f32.mrf.mxu0
    %v1929 = vadd.f32 0.0, %v1928
    %1930 = vmatmul.f32.gmra.mxu0 %v1903
    %v1931 = vpop.f32.mrf.mxu0
    %v1932 = vadd.f32 0.0, %v1931
    %1933 = vmatmul.f32.gmra.mxu0 %v1906
    %v1934 = vpop.f32.mrf.mxu0
    %v1935 = vadd.f32 0.0, %v1934
    %1936 = vdwg.mxu0
    %1941 = vrot.lane.b32.xlu0 %v1610, 8
    %v1942 = vpop.permute.xlu0 %1941
    %1943 = vrot.lane.b32.xlu0 %v1613, 8
    %v1944 = vpop.permute.xlu0 %1943
    %1945 = vrot.lane.b32.xlu0 %v1616, 8
    %v1946 = vpop.permute.xlu0 %1945
    %1947 = vrot.lane.b32.xlu0 %v1619, 8
    %v1948 = vpop.permute.xlu0 %1947
    %1957 = vrot.lane.b32.xlu0 %v1768, 16
    %v1958 = vpop.permute.xlu0 %1957
    %1959 = vrot.lane.b32.xlu0 %v1771, 16
    %v1960 = vpop.permute.xlu0 %1959
    %1961 = vrot.lane.b32.xlu0 %v1774, 16
    %v1962 = vpop.permute.xlu0 %1961
    %1963 = vrot.lane.b32.xlu0 %v1777, 16
    %v1964 = vpop.permute.xlu0 %1963
    %1973 = vrot.lane.b32.xlu0 %v1926, 24
    %v1974 = vpop.permute.xlu0 %1973
    %1975 = vrot.lane.b32.xlu0 %v1929, 24
    %v1976 = vpop.permute.xlu0 %1975
    %1977 = vrot.lane.b32.xlu0 %v1932, 24
    %v1978 = vpop.permute.xlu0 %1977
    %1979 = vrot.lane.b32.xlu0 %v1935, 24
    %v1980 = vpop.permute.xlu0 %1979
    %v1985 = vsel %vm207, %v1452, %v1942
    %v1986 = vsel %vm207, %v1455, %v1944
    %v1987 = vsel %vm207, %v1458, %v1946
    %v1988 = vsel %vm207, %v1461, %v1948
    %v1989 = vsel %vm876, %v1985, %v1958
    %v1990 = vsel %vm876, %v1986, %v1960
    %v1991 = vsel %vm876, %v1987, %v1962
    %v1992 = vsel %vm876, %v1988, %v1964
    %v1993 = vsel %vm881, %v1989, %v1974
    %v1994 = vsel %vm881, %v1990, %v1976
    %v1995 = vsel %vm881, %v1991, %v1978
    %v1996 = vsel %vm881, %v1992, %v1980
    %s1997 = scalar_lea.vmem %s4, 32
    %v1998 = vld [vmem:[%s1997] sm:$0xff]
    %v1999 = vld [vmem:[%s1997 + $0x8] sm:$0xff]
    %v2000 = vld [vmem:[%s1997 + $0x10] sm:$0xff]
    %v2001 = vld [vmem:[%s1997 + $0x18] sm:$0xff]
    %s2002 = scalar_lea.vmem %s5, 1
    %v2003 = vld [vmem:[%s2002] sm:$0x1]
    %v2005 = vperm.slane %v2003, 0
    %v2008 = vsel %vm50, %v1993, 0
    %v2011 = vsel %vm50, %v1994, 0
    %v2014 = vsel %vm50, %v1995, 0
    %v2017 = vsel %vm50, %v1996, 0
    %2019 = vmatpush.msra.mxu0 0.0
    %2020 = vmatpush.msra.mxu0 0.0
    %2021 = vmatpush.msra.mxu0 0.0
    %2022 = vmatpush.msra.mxu0 0.0
    %2023 = vmatpush.msra.mxu0 0.0
    %2024 = vmatpush.msra.mxu0 0.0
    %2025 = vmatpush.msra.mxu0 0.0
    %2026 = vmatpush.msra.mxu0 0.0
    %2027 = vmatpush.msra.mxu0 0.0
    %2028 = vmatpush.msra.mxu0 0.0
    %2029 = vmatpush.msra.mxu0 0.0
    %2030 = vmatpush.msra.mxu0 0.0
    %2031 = vmatpush.msra.mxu0 %v2001
    %2032 = vmatpush.msra.mxu0 %v2000
    %2033 = vmatpush.msra.mxu0 %v1999
    %2034 = vmatpush.msra.mxu0 %v1998
    %2035 = vmatmul.f32.gmra.mxu0 %v2008
    %v2036 = vpop.f32.mrf.mxu0
    %v2037 = vadd.f32 %v2005, %v2036
    %2038 = vmatmul.f32.gmra.mxu0 %v2011
    %v2039 = vpop.f32.mrf.mxu0
    %v2040 = vadd.f32 %v2005, %v2039
    %2041 = vmatmul.f32.gmra.mxu0 %v2014
    %v2042 = vpop.f32.mrf.mxu0
    %v2043 = vadd.f32 %v2005, %v2042
    %2044 = vmatmul.f32.gmra.mxu0 %v2017
    %v2045 = vpop.f32.mrf.mxu0
    %v2046 = vadd.f32 %v2005, %v2045
    %2047 = vdwg.mxu0
    %v2048 = vadd.f32 %v1166, %v2037
    %v2049 = vadd.f32 %v1167, %v2040
    %v2050 = vadd.f32 %v1168, %v2043
    %v2051 = vadd.f32 %v1169, %v2046
    %v2052 = vsel %vm50, %v2048, 0.0
    %2053 = vadd.xlane.f32.xlu0 %v2052
    %v2054 = vpop.xlane.xlu0 %2053
    %v2055 = vsel %vm50, %v2049, 0.0
    %2056 = vadd.xlane.f32.xlu0 %v2055
    %v2057 = vpop.xlane.xlu0 %2056
    %v2058 = vsel %vm50, %v2050, 0.0
    %2059 = vadd.xlane.f32.xlu0 %v2058
    %v2060 = vpop.xlane.xlu0 %2059
    %v2061 = vsel %vm50, %v2051, 0.0
    %2062 = vadd.xlane.f32.xlu0 %v2061
    %v2063 = vpop.xlane.xlu0 %2062
    %v2064 = vmul.f32 %v2054, %v69
    %v2065 = vmul.f32 %v2057, %v69
    %v2066 = vmul.f32 %v2060, %v69
    %v2067 = vmul.f32 %v2063, %v69
    %v2068 = vsub.f32 %v2048, %v2064
    %v2069 = vsub.f32 %v2049, %v2065
    %v2070 = vsub.f32 %v2050, %v2066
    %v2071 = vsub.f32 %v2051, %v2067
    %v2072 = vmul.f32 %v2068, %v2068
    %v2073 = vmul.f32 %v2069, %v2069
    %v2074 = vmul.f32 %v2070, %v2070
    %v2075 = vmul.f32 %v2071, %v2071
    %v2076 = vsel %vm50, %v2072, 0.0
    %2077 = vadd.xlane.f32.xlu0 %v2076
    %v2078 = vpop.xlane.xlu0 %2077
    %v2079 = vsel %vm50, %v2073, 0.0
    %2080 = vadd.xlane.f32.xlu0 %v2079
    %v2081 = vpop.xlane.xlu0 %2080
    %v2082 = vsel %vm50, %v2074, 0.0
    %2083 = vadd.xlane.f32.xlu0 %v2082
    %v2084 = vpop.xlane.xlu0 %2083
    %v2085 = vsel %vm50, %v2075, 0.0
    %2086 = vadd.xlane.f32.xlu0 %v2085
    %v2087 = vpop.xlane.xlu0 %2086
    %v2088 = vmul.f32 %v2078, %v69
    %v2089 = vmul.f32 %v2081, %v69
    %v2090 = vmul.f32 %v2084, %v69
    %v2091 = vmul.f32 %v2087, %v69
    %v2092 = vadd.f32 %v2088, 1e-05
    %v2093 = vadd.f32 %v2089, 1e-05
    %v2094 = vadd.f32 %v2090, 1e-05
    %v2095 = vadd.f32 %v2091, 1e-05
    %v2096 = vrsqrt.pop %v2092
    %v2097 = vmul.f32 %v2096, %v2092
    %v2098 = vmul.f32 %v2097, %v2096
    %v2099 = vmul.f32 0.5, %v2098
    %v2100 = vsub.f32 1.5, %v2099
    %v2101 = vmul.f32 %v2096, %v2100
    %vm2102 = vweird.f32 %v2092
    %vm2103 = vweird.f32 %v2096
    %vm2104 = vmor %vm2102, %vm2103
    %v2105 = vsel %vm2104, %v2096, %v2101
    %v2106 = vrsqrt.pop %v2093
    %v2107 = vmul.f32 %v2106, %v2093
    %v2108 = vmul.f32 %v2107, %v2106
    %v2109 = vmul.f32 0.5, %v2108
    %v2110 = vsub.f32 1.5, %v2109
    %v2111 = vmul.f32 %v2106, %v2110
    %vm2112 = vweird.f32 %v2093
    %vm2113 = vweird.f32 %v2106
    %vm2114 = vmor %vm2112, %vm2113
    %v2115 = vsel %vm2114, %v2106, %v2111
    %v2116 = vrsqrt.pop %v2094
    %v2117 = vmul.f32 %v2116, %v2094
    %v2118 = vmul.f32 %v2117, %v2116
    %v2119 = vmul.f32 0.5, %v2118
    %v2120 = vsub.f32 1.5, %v2119
    %v2121 = vmul.f32 %v2116, %v2120
    %vm2122 = vweird.f32 %v2094
    %vm2123 = vweird.f32 %v2116
    %vm2124 = vmor %vm2122, %vm2123
    %v2125 = vsel %vm2124, %v2116, %v2121
    %v2126 = vrsqrt.pop %v2095
    %v2127 = vmul.f32 %v2126, %v2095
    %v2128 = vmul.f32 %v2127, %v2126
    %v2129 = vmul.f32 0.5, %v2128
    %v2130 = vsub.f32 1.5, %v2129
    %v2131 = vmul.f32 %v2126, %v2130
    %vm2132 = vweird.f32 %v2095
    %vm2133 = vweird.f32 %v2126
    %vm2134 = vmor %vm2132, %vm2133
    %v2135 = vsel %vm2134, %v2126, %v2131
    %v2136 = vmul.f32 %v2068, %v2105
    %v2137 = vmul.f32 %v2069, %v2115
    %v2138 = vmul.f32 %v2070, %v2125
    %v2139 = vmul.f32 %v2071, %v2135
    %s2140 = scalar_lea.vmem %s6, 32
    %v2141 = vld [vmem:[%s2140] sm:$0xff]
    %v2142 = vld [vmem:[%s2140 + $0x8] sm:$0xff]
    %v2143 = vld [vmem:[%s2140 + $0x10] sm:$0xff]
    %v2144 = vld [vmem:[%s2140 + $0x18] sm:$0xff]
    %s2145 = scalar_lea.vmem %s7, 1
    %v2146 = vld [vmem:[%s2145] sm:$0x1]
    %v2148 = vperm.slane %v2146, 0
    %v2151 = vsel %vm50, %v2136, 0
    %v2154 = vsel %vm50, %v2137, 0
    %v2157 = vsel %vm50, %v2138, 0
    %v2160 = vsel %vm50, %v2139, 0
    %2162 = vmatpush.msra.mxu0 0.0
    %2163 = vmatpush.msra.mxu0 0.0
    %2164 = vmatpush.msra.mxu0 0.0
    %2165 = vmatpush.msra.mxu0 0.0
    %2166 = vmatpush.msra.mxu0 0.0
    %2167 = vmatpush.msra.mxu0 0.0
    %2168 = vmatpush.msra.mxu0 0.0
    %2169 = vmatpush.msra.mxu0 0.0
    %2170 = vmatpush.msra.mxu0 0.0
    %2171 = vmatpush.msra.mxu0 0.0
    %2172 = vmatpush.msra.mxu0 0.0
    %2173 = vmatpush.msra.mxu0 0.0
    %2174 = vmatpush.msra.mxu0 %v2144
    %2175 = vmatpush.msra.mxu0 %v2143
    %2176 = vmatpush.msra.mxu0 %v2142
    %2177 = vmatpush.msra.mxu0 %v2141
    %2178 = vmatmul.f32.gmra.mxu0 %v2151
    %v2179 = vpop.f32.mrf.mxu0
    %v2180 = vadd.f32 %v2148, %v2179
    %2181 = vmatmul.f32.gmra.mxu0 %v2154
    %v2182 = vpop.f32.mrf.mxu0
    %v2183 = vadd.f32 %v2148, %v2182
    %2184 = vmatmul.f32.gmra.mxu0 %v2157
    %v2185 = vpop.f32.mrf.mxu0
    %v2186 = vadd.f32 %v2148, %v2185
    %2187 = vmatmul.f32.gmra.mxu0 %v2160
    %v2188 = vpop.f32.mrf.mxu0
    %v2189 = vadd.f32 %v2148, %v2188
    %2190 = vdwg.mxu0
    %v2191 = vmul.f32 %v2180, %v2180
    %v2192 = vmul.f32 %v2183, %v2183
    %v2193 = vmul.f32 %v2186, %v2186
    %v2194 = vmul.f32 %v2189, %v2189
    %v2195 = vmul.f32 %v2180, %v2191
    %v2196 = vmul.f32 %v2183, %v2192
    %v2197 = vmul.f32 %v2186, %v2193
    %v2198 = vmul.f32 %v2189, %v2194
    %v2199 = vmul.f32 %v2195, 0.044715
    %v2200 = vmul.f32 %v2196, 0.044715
    %v2201 = vmul.f32 %v2197, 0.044715
    %v2202 = vmul.f32 %v2198, 0.044715
    %v2203 = vadd.f32 %v2180, %v2199
    %v2204 = vadd.f32 %v2183, %v2200
    %v2205 = vadd.f32 %v2186, %v2201
    %v2206 = vadd.f32 %v2189, %v2202
    %v2207 = vmul.f32 %v2203, 0.7978846
    %v2208 = vmul.f32 %v2204, 0.7978846
    %v2209 = vmul.f32 %v2205, 0.7978846
    %v2210 = vmul.f32 %v2206, 0.7978846
    %v2211 = vtanh.pop %v2207
    %v2212 = vtanh.pop %v2208
    %v2213 = vtanh.pop %v2209
    %v2214 = vtanh.pop %v2210
    %v2215 = vadd.f32 %v2211, 1.0
    %v2216 = vadd.f32 %v2212, 1.0
    %v2217 = vadd.f32 %v2213, 1.0
    %v2218 = vadd.f32 %v2214, 1.0
    %v2219 = vmul.f32 %v2215, 0.5
    %v2220 = vmul.f32 %v2216, 0.5
    %v2221 = vmul.f32 %v2217, 0.5
    %v2222 = vmul.f32 %v2218, 0.5
    %v2223 = vmul.f32 %v2180, %v2219
    %v2224 = vmul.f32 %v2183, %v2220
    %v2225 = vmul.f32 %v2186, %v2221
    %v2226 = vmul.f32 %v2189, %v2222
    %s2227 = scalar_lea.vmem %s8, 64
    %v2228 = vld [vmem:[%s2227] sm:$0xff]
    %v2229 = vld [vmem:[%s2227 + $0x8] sm:$0xff]
    %v2230 = vld [vmem:[%s2227 + $0x10] sm:$0xff]
    %v2231 = vld [vmem:[%s2227 + $0x18] sm:$0xff]
    %v2232 = vld [vmem:[%s2227 + $0x20] sm:$0xff]
    %v2233 = vld [vmem:[%s2227 + $0x28] sm:$0xff]
    %v2234 = vld [vmem:[%s2227 + $0x30] sm:$0xff]
    %v2235 = vld [vmem:[%s2227 + $0x38] sm:$0xff]
    %s2236 = scalar_lea.vmem %s9, 1
    %v2237 = vld [vmem:[%s2236] sm:$0x1]
    %v2239 = vperm.slane %v2237, 0
    %v2242 = vsel %vm1124, %v2223, 0
    %v2245 = vsel %vm1124, %v2224, 0
    %v2248 = vsel %vm1124, %v2225, 0
    %v2251 = vsel %vm1124, %v2226, 0
    %2253 = vmatpush.msra.mxu0 0.0
    %2254 = vmatpush.msra.mxu0 0.0
    %2255 = vmatpush.msra.mxu0 0.0
    %2256 = vmatpush.msra.mxu0 0.0
    %2257 = vmatpush.msra.mxu0 0.0
    %2258 = vmatpush.msra.mxu0 0.0
    %2259 = vmatpush.msra.mxu0 0.0
    %2260 = vmatpush.msra.mxu0 0.0
    %2261 = vmatpush.msra.mxu0 %v2235
    %2262 = vmatpush.msra.mxu0 %v2234
    %2263 = vmatpush.msra.mxu0 %v2233
    %2264 = vmatpush.msra.mxu0 %v2232
    %2265 = vmatpush.msra.mxu0 %v2231
    %2266 = vmatpush.msra.mxu0 %v2230
    %2267 = vmatpush.msra.mxu0 %v2229
    %2268 = vmatpush.msra.mxu0 %v2228
    %2269 = vmatmul.f32.gmra.mxu0 %v2242
    %v2270 = vpop.f32.mrf.mxu0
    %v2271 = vadd.f32 %v2239, %v2270
    %2272 = vmatmul.f32.gmra.mxu0 %v2245
    %v2273 = vpop.f32.mrf.mxu0
    %v2274 = vadd.f32 %v2239, %v2273
    %2275 = vmatmul.f32.gmra.mxu0 %v2248
    %v2276 = vpop.f32.mrf.mxu0
    %v2277 = vadd.f32 %v2239, %v2276
    %2278 = vmatmul.f32.gmra.mxu0 %v2251
    %v2279 = vpop.f32.mrf.mxu0
    %v2280 = vadd.f32 %v2239, %v2279
    %2281 = vdwg.mxu0
    %v2282 = vadd.f32 %v2048, %v2271
    %v2283 = vadd.f32 %v2049, %v2274
    %v2284 = vadd.f32 %v2050, %v2277
    %v2285 = vadd.f32 %v2051, %v2280
    %v2286 = vsel %vm50, %v2282, 0.0
    %2287 = vadd.xlane.f32.xlu0 %v2286
    %v2288 = vpop.xlane.xlu0 %2287
    %v2289 = vsel %vm50, %v2283, 0.0
    %2290 = vadd.xlane.f32.xlu0 %v2289
    %v2291 = vpop.xlane.xlu0 %2290
    %v2292 = vsel %vm50, %v2284, 0.0
    %2293 = vadd.xlane.f32.xlu0 %v2292
    %v2294 = vpop.xlane.xlu0 %2293
    %v2295 = vsel %vm50, %v2285, 0.0
    %2296 = vadd.xlane.f32.xlu0 %v2295
    %v2297 = vpop.xlane.xlu0 %2296
    %v2298 = vmul.f32 %v2288, %v69
    %v2299 = vmul.f32 %v2291, %v69
    %v2300 = vmul.f32 %v2294, %v69
    %v2301 = vmul.f32 %v2297, %v69
    %v2302 = vsub.f32 %v2282, %v2298
    %v2303 = vsub.f32 %v2283, %v2299
    %v2304 = vsub.f32 %v2284, %v2300
    %v2305 = vsub.f32 %v2285, %v2301
    %v2306 = vmul.f32 %v2302, %v2302
    %v2307 = vmul.f32 %v2303, %v2303
    %v2308 = vmul.f32 %v2304, %v2304
    %v2309 = vmul.f32 %v2305, %v2305
    %v2310 = vsel %vm50, %v2306, 0.0
    %2311 = vadd.xlane.f32.xlu0 %v2310
    %v2312 = vpop.xlane.xlu0 %2311
    %v2313 = vsel %vm50, %v2307, 0.0
    %2314 = vadd.xlane.f32.xlu0 %v2313
    %v2315 = vpop.xlane.xlu0 %2314
    %v2316 = vsel %vm50, %v2308, 0.0
    %2317 = vadd.xlane.f32.xlu0 %v2316
    %v2318 = vpop.xlane.xlu0 %2317
    %v2319 = vsel %vm50, %v2309, 0.0
    %2320 = vadd.xlane.f32.xlu0 %v2319
    %v2321 = vpop.xlane.xlu0 %2320
    %v2322 = vmul.f32 %v2312, %v69
    %v2323 = vmul.f32 %v2315, %v69
    %v2324 = vmul.f32 %v2318, %v69
    %v2325 = vmul.f32 %v2321, %v69
    %v2326 = vadd.f32 %v2322, 1e-05
    %v2327 = vadd.f32 %v2323, 1e-05
    %v2328 = vadd.f32 %v2324, 1e-05
    %v2329 = vadd.f32 %v2325, 1e-05
    %v2330 = vrsqrt.pop %v2326
    %v2331 = vmul.f32 %v2330, %v2326
    %v2332 = vmul.f32 %v2331, %v2330
    %v2333 = vmul.f32 0.5, %v2332
    %v2334 = vsub.f32 1.5, %v2333
    %v2335 = vmul.f32 %v2330, %v2334
    %vm2336 = vweird.f32 %v2326
    %vm2337 = vweird.f32 %v2330
    %vm2338 = vmor %vm2336, %vm2337
    %v2339 = vsel %vm2338, %v2330, %v2335
    %v2340 = vrsqrt.pop %v2327
    %v2341 = vmul.f32 %v2340, %v2327
    %v2342 = vmul.f32 %v2341, %v2340
    %v2343 = vmul.f32 0.5, %v2342
    %v2344 = vsub.f32 1.5, %v2343
    %v2345 = vmul.f32 %v2340, %v2344
    %vm2346 = vweird.f32 %v2327
    %vm2347 = vweird.f32 %v2340
    %vm2348 = vmor %vm2346, %vm2347
    %v2349 = vsel %vm2348, %v2340, %v2345
    %v2350 = vrsqrt.pop %v2328
    %v2351 = vmul.f32 %v2350, %v2328
    %v2352 = vmul.f32 %v2351, %v2350
    %v2353 = vmul.f32 0.5, %v2352
    %v2354 = vsub.f32 1.5, %v2353
    %v2355 = vmul.f32 %v2350, %v2354
    %vm2356 = vweird.f32 %v2328
    %vm2357 = vweird.f32 %v2350
    %vm2358 = vmor %vm2356, %vm2357
    %v2359 = vsel %vm2358, %v2350, %v2355
    %v2360 = vrsqrt.pop %v2329
    %v2361 = vmul.f32 %v2360, %v2329
    %v2362 = vmul.f32 %v2361, %v2360
    %v2363 = vmul.f32 0.5, %v2362
    %v2364 = vsub.f32 1.5, %v2363
    %v2365 = vmul.f32 %v2360, %v2364
    %vm2366 = vweird.f32 %v2329
    %vm2367 = vweird.f32 %v2360
    %vm2368 = vmor %vm2366, %vm2367
    %v2369 = vsel %vm2368, %v2360, %v2365
    %v2370 = vmul.f32 %v2302, %v2339
    %v2371 = vmul.f32 %v2303, %v2349
    %v2372 = vmul.f32 %v2304, %v2359
    %v2373 = vmul.f32 %v2305, %v2369
    %v2374 = vld [vmem:[%s10] sm:$0x1]
    %v2376 = vperm.slane %v2374, 0
    %v2378 = vmul.f32 %v2370, %v2376
    %v2379 = vmul.f32 %v2371, %v2376
    %v2380 = vmul.f32 %v2372, %v2376
    %v2381 = vmul.f32 %v2373, %v2376
    %v2382 = vld [vmem:[%s11] sm:$0x1]
    %v2384 = vperm.slane %v2382, 0
    %v2386 = vadd.f32 %v2378, %v2384
    %v2387 = vadd.f32 %v2379, %v2384
    %v2388 = vadd.f32 %v2380, %v2384
    %v2389 = vadd.f32 %v2381, %v2384
    %2390 = vst.msk [vmem:[#allocation2] sm:$0xff] %vm50, %v2386
    %2391 = vst.msk [vmem:[#allocation2 + $0x8] sm:$0xff] %vm50, %v2387
    %2392 = vst.msk [vmem:[#allocation2 + $0x10] sm:$0xff] %vm50, %v2388
    %2393 = vst.msk [vmem:[#allocation2 + $0x18] sm:$0xff] %vm50, %v2389
    // Predicated region
    $region50: #{encode.1} parent=1 // pred_check
      _
    $region51: #{encode.1} parent=1 // pred_check_branch
      %2395 = sbr.rel (0) target = $region53
    $region52: #{encode.1} parent=1 // pred_region
      %2397 = vsyncadd [#allocation3], 0
      %s2398 = sshll.u32 [#allocation2], 4
      %s2399 = int_to_ptr.vmem [resolvable:$true] %s2398
      %s2400 = sshll.u32 %s12, 4
      %s2401 = int_to_ptr.hbm [resolvable:$true] %s2400
      %2406 = dma.vmem_to_hbm [thread:$0]  %s2399, 512, %s2401, [#allocation3], 128, 128, 8
    $region53: #{encode.1} parent=1 // pred_fallthru
      _
    // Predicated region
    $region54: #{encode.1} parent=1 // pred_check
      _
    $region55: #{encode.1} parent=1 // pred_check_branch
      %2408 = sbr.rel (0) target = $region57
    $region56: #{encode.1} parent=1 // pred_region
      %2410 = dma.done [#allocation3], 512
    $region57: #{encode.1} parent=1 // pred_fallthru
      _
    %2411 = vsyncpa [#allocation3], 1

</llo_original>
